<compile_context>
chip_gen: v7x
topology: tpu7x:2x2x1
jax: 0.10.0
libtpu: 0.0.40
codegen_flags: <defaults>
</compile_context>

<pallas_src>
import math
import jax
import jax.numpy as jnp
from jax.experimental import pallas as pl
from jax.experimental.pallas import tpu as pltpu


def _lstm_encoder_kernel(tok_ref, len_ref, emb_ref, w0_ref, b0_ref,
                         w1_ref, b1_ref, out_ref, hn_ref, cn_ref):
    """tok_ref: (B,T) int32 in SMEM, len_ref: (B,1) int32,
    emb_ref: (V,1,E), w*_ref: (E+H or 2H, 4H) fused [Wih;Whh]^T, b*_ref: (1,4H),
    out_ref: (B,T,H) batch-first, hn_ref/cn_ref: (2,B,H)."""
    B, T, H = out_ref.shape

    # --- hoisted: weights/biases/lengths read once, stay in vregs -----------
    w0 = w0_ref[...]                        # (E+H, 4H)
    b0 = b0_ref[...]                        # (1, 4H)
    w1 = w1_ref[...]                        # (2H, 4H)
    b1 = b1_ref[...]                        # (1, 4H)
    lens = len_ref[...]                     # (B, 1) int32

    h0 = jnp.zeros((B, H), jnp.float32)
    c0 = jnp.zeros((B, H), jnp.float32)
    h1 = jnp.zeros((B, H), jnp.float32)
    c1 = jnp.zeros((B, H), jnp.float32)

    def cell(xh, w, b, c_prev):
        # single fused matmul per layer per step (PyTorch gate order i,f,g,o)
        gates = jnp.dot(xh, w, preferred_element_type=jnp.float32) + b  # (B,4H)
        # full-width transcendentals (one sigmoid + one tanh over all 4H lanes)
        sg = jax.nn.sigmoid(gates)
        th = jnp.tanh(gates)
        i = sg[:, 0 * H:1 * H]
        f = sg[:, 1 * H:2 * H]
        g = th[:, 2 * H:3 * H]
        o = sg[:, 3 * H:4 * H]
        c_new = f * c_prev + i * g
        h_new = o * jnp.tanh(c_new)
        return h_new, c_new

    # fully unrolled static time loop: states carried in registers
    for t in range(T):
        mask = lens > t                                    # (B,1) packed-seq mask

        # in-kernel embedding gather: one dynamic row load per batch element
        x_t = jnp.concatenate(
            [emb_ref[tok_ref[b, t]] for b in range(B)], axis=0)      # (B, E)

        # layer 0: fused [x_t | h0] @ W0
        h0n, c0n = cell(jnp.concatenate([x_t, h0], axis=1), w0, b0, c0)
        h0 = jnp.where(mask, h0n, h0)
        c0 = jnp.where(mask, c0n, c0)

        # layer 1 (inter-layer dropout is identity in eval mode)
        h1n, c1n = cell(jnp.concatenate([h0, h1], axis=1), w1, b1, c1)
        h1 = jnp.where(mask, h1n, h1)
        c1 = jnp.where(mask, c1n, c1)

        # pad_packed_sequence zero-pads past each length; write batch-first
        out_ref[:, t, :] = jnp.where(mask, h1, jnp.zeros_like(h1))

    hn_ref[0] = h0
    hn_ref[1] = h1
    cn_ref[0] = c0
    cn_ref[1] = c1


def init_encoder_params(key, num_features=20, emb_size=32, hidden_size=32,
                        padding_idx=0):
    ks = jax.random.split(key, 9)
    emb = jax.random.normal(ks[0], (num_features, emb_size), jnp.float32)
    emb = emb.at[padding_idx].set(0.0)                     # padding_idx row
    k = 1.0 / math.sqrt(hidden_size)

    def u(kk, shape):
        return jax.random.uniform(kk, shape, jnp.float32, -k, k)

    H = hidden_size
    return {
        "emb": emb,
        # layer 0
        "w_ih0": u(ks[1], (4 * H, emb_size)),
        "w_hh0": u(ks[2], (4 * H, H)),
        "b_ih0": u(ks[3], (4 * H,)),
        "b_hh0": u(ks[4], (4 * H,)),
        # layer 1
        "w_ih1": u(ks[5], (4 * H, H)),
        "w_hh1": u(ks[6], (4 * H, H)),
        "b_ih1": u(ks[7], (4 * H,)),
        "b_hh1": u(ks[8], (4 * H,)),
    }


@jax.jit
def encoder_forward(src_seq, params):
    """src_seq: (B, T) int32.  Returns (encoder_output (B,T,H), (h_n, c_n))."""
    B, T = src_seq.shape
    emb = params["emb"]
    V, E = emb.shape
    H = params["w_hh0"].shape[1]

    # same length rule as the PyTorch module: lengths = sum(src_seq > 0)
    lens = jnp.sum((src_seq > 0).astype(jnp.int32), axis=1).reshape(B, 1)

    # fused per-layer weights: [Wih ; Whh]^T  ->  (in_dim + H, 4H), i,f,g,o order
    W0 = jnp.concatenate([params["w_ih0"].T, params["w_hh0"].T], axis=0)
    b0 = (params["b_ih0"] + params["b_hh0"]).reshape(1, 4 * H)
    W1 = jnp.concatenate([params["w_ih1"].T, params["w_hh1"].T], axis=0)
    b1 = (params["b_ih1"] + params["b_hh1"]).reshape(1, 4 * H)

    # (V, 1, E): dynamic first-axis indexing in-kernel gives one (1, E) row
    emb3 = emb.reshape(V, 1, E)

    vmem = pl.BlockSpec(memory_space=pltpu.MemorySpace.VMEM)
    smem = pl.BlockSpec(memory_space=pltpu.MemorySpace.SMEM)

    out, h_n, c_n = pl.pallas_call(
        _lstm_encoder_kernel,
        out_shape=(
            jax.ShapeDtypeStruct((B, T, H), jnp.float32),   # batch-first output
            jax.ShapeDtypeStruct((2, B, H), jnp.float32),   # h_n
            jax.ShapeDtypeStruct((2, B, H), jnp.float32),   # c_n
        ),
        in_specs=[smem, vmem, vmem, vmem, vmem, vmem, vmem],
        out_specs=(vmem, vmem, vmem),
    )(src_seq.astype(jnp.int32), lens.astype(jnp.int32),
      emb3, W0, b0, W1, b1)

    return out, (h_n, c_n)


if __name__ == "__main__":
    key = jax.random.PRNGKey(0)
    k_param, k_tok = jax.random.split(key)

    B, T = 2, 8
    num_features, emb_size, hidden_size = 20, 32, 32

    params = init_encoder_params(k_param, num_features, emb_size, hidden_size)

    # tokens in [1, vocab), with trailing padding (token 0) to exercise the
    # packed-sequence masking path; lengths sorted decreasing like pack_padded.
    tokens = jax.random.randint(k_tok, (B, T), 1, num_features, jnp.int32)
    lengths = jnp.array([8, 5], jnp.int32)
    pos = jnp.arange(T)[None, :]
    src_seq = jnp.where(pos < lengths[:, None], tokens, 0)

    enc_out, (h_n, c_n) = encoder_forward(src_seq, params)
    jax.block_until_ready((enc_out, h_n, c_n))

    assert enc_out.shape == (B, T, hidden_size)
    assert h_n.shape == (2, B, hidden_size)
    assert c_n.shape == (2, B, hidden_size)
    # padded timesteps of the shorter sequence must be zero (pad_packed semantics)
    assert jnp.allclose(enc_out[1, 5:], 0.0)
    # finite outputs
    assert bool(jnp.all(jnp.isfinite(enc_out))) and bool(jnp.all(jnp.isfinite(h_n)))

    print("KERNEL_OK")
</pallas_src>

<mosaic_0001>
module attributes {stable_mosaic.version = 11 : i64} {
  func.func @_lstm_encoder_kernel(%arg0: memref<2x8xi32, #tpu.memory_space<smem>>, %arg1: memref<2x1xi32, #tpu.memory_space<vmem>>, %arg2: memref<20x1x32xf32, #tpu.memory_space<vmem>>, %arg3: memref<64x128xf32, #tpu.memory_space<vmem>>, %arg4: memref<1x128xf32, #tpu.memory_space<vmem>>, %arg5: memref<64x128xf32, #tpu.memory_space<vmem>>, %arg6: memref<1x128xf32, #tpu.memory_space<vmem>>, %arg7: memref<2x8x32xf32, #tpu.memory_space<vmem>>, %arg8: memref<2x2x32xf32, #tpu.memory_space<vmem>>, %arg9: memref<2x2x32xf32, #tpu.memory_space<vmem>>) attributes {dimension_semantics = [], scalar_prefetch = 0 : i64, scratch_operands = 0 : i64, tpu.core_type = #tpu.core_type<tc>} {
    %c0 = arith.constant 0 : index
    %c0_0 = arith.constant 0 : index
    %0 = vector.load %arg3[%c0, %c0_0] : memref<64x128xf32, #tpu.memory_space<vmem>>, vector<64x128xf32>
    %c0_1 = arith.constant 0 : index
    %c0_2 = arith.constant 0 : index
    %1 = vector.load %arg4[%c0_1, %c0_2] : memref<1x128xf32, #tpu.memory_space<vmem>>, vector<1x128xf32>
    %c0_3 = arith.constant 0 : index
    %c0_4 = arith.constant 0 : index
    %2 = vector.load %arg5[%c0_3, %c0_4] : memref<64x128xf32, #tpu.memory_space<vmem>>, vector<64x128xf32>
    %c0_5 = arith.constant 0 : index
    %c0_6 = arith.constant 0 : index
    %3 = vector.load %arg6[%c0_5, %c0_6] : memref<1x128xf32, #tpu.memory_space<vmem>>, vector<1x128xf32>
    %c0_7 = arith.constant 0 : index
    %c0_8 = arith.constant 0 : index
    %4 = vector.load %arg1[%c0_7, %c0_8] : memref<2x1xi32, #tpu.memory_space<vmem>>, vector<2x1xi32>
    %cst = arith.constant 0.000000e+00 : f32
    %5 = vector.broadcast %cst : f32 to vector<2x32xf32>
    %cst_9 = arith.constant 0.000000e+00 : f32
    %6 = vector.broadcast %cst_9 : f32 to vector<2x32xf32>
    %cst_10 = arith.constant 0.000000e+00 : f32
    %7 = vector.broadcast %cst_10 : f32 to vector<2x32xf32>
    %cst_11 = arith.constant 0.000000e+00 : f32
    %8 = vector.broadcast %cst_11 : f32 to vector<2x32xf32>
    %c0_i32 = arith.constant 0 : i32
    %9 = vector.broadcast %c0_i32 : i32 to vector<2x1xi32>
    %10 = arith.cmpi sgt, %4, %9 : vector<2x1xi32>
    %c0_12 = arith.constant 0 : index
    %c0_13 = arith.constant 0 : index
    %11 = memref.load %arg0[%c0_12, %c0_13] : memref<2x8xi32, #tpu.memory_space<smem>>
    %12 = arith.index_cast %11 : i32 to index
    %c0_14 = arith.constant 0 : index
    %c0_15 = arith.constant 0 : index
    %13 = vector.load %arg2[%12, %c0_14, %c0_15] : memref<20x1x32xf32, #tpu.memory_space<vmem>>, vector<1x1x32xf32>
    %14 = vector.shape_cast %13 : vector<1x1x32xf32> to vector<1x32xf32>
    %c1 = arith.constant 1 : index
    %c0_16 = arith.constant 0 : index
    %15 = memref.load %arg0[%c1, %c0_16] : memref<2x8xi32, #tpu.memory_space<smem>>
    %16 = arith.index_cast %15 : i32 to index
    %c0_17 = arith.constant 0 : index
    %c0_18 = arith.constant 0 : index
    %17 = vector.load %arg2[%16, %c0_17, %c0_18] : memref<20x1x32xf32, #tpu.memory_space<vmem>>, vector<1x1x32xf32>
    %18 = vector.shape_cast %17 : vector<1x1x32xf32> to vector<1x32xf32>
    %19 = tpu.concatenate %14, %18 in 0 : vector<1x32xf32>, vector<1x32xf32> -> vector<2x32xf32>
    %20 = tpu.concatenate %19, %5 in 1 : vector<2x32xf32>, vector<2x32xf32> -> vector<2x64xf32>
    %cst_19 = arith.constant dense<0.000000e+00> : vector<2x128xf32>
    %21 = tpu.matmul %20, %0, %cst_19 {dimension_numbers = #tpu.dot_dimension_numbers<[1], [0], [0], [1], [0, 0, 1, 1], [], []>} : vector<2x64xf32>, vector<64x128xf32>, vector<2x128xf32> -> vector<2x128xf32>
    %22 = vector.broadcast %1 : vector<1x128xf32> to vector<2x128xf32>
    %23 = arith.addf %21, %22 : vector<2x128xf32>
    %24 = arith.negf %23 : vector<2x128xf32>
    %25 = math.exp %24 : vector<2x128xf32>
    %cst_20 = arith.constant 1.000000e+00 : f32
    %26 = vector.broadcast %cst_20 : f32 to vector<2x128xf32>
    %27 = arith.addf %26, %25 : vector<2x128xf32>
    %28 = arith.divf %26, %27 : vector<2x128xf32>
    %29 = math.tanh %23 : vector<2x128xf32>
    %30 = vector.extract_strided_slice %28 {offsets = [0, 0], sizes = [2, 32], strides = [1, 1]} : vector<2x128xf32> to vector<2x32xf32>
    %31 = vector.extract_strided_slice %28 {offsets = [0, 32], sizes = [2, 32], strides = [1, 1]} : vector<2x128xf32> to vector<2x32xf32>
    %32 = vector.extract_strided_slice %29 {offsets = [0, 64], sizes = [2, 32], strides = [1, 1]} : vector<2x128xf32> to vector<2x32xf32>
    %33 = vector.extract_strided_slice %28 {offsets = [0, 96], sizes = [2, 32], strides = [1, 1]} : vector<2x128xf32> to vector<2x32xf32>
    %34 = arith.mulf %31, %6 : vector<2x32xf32>
    %35 = arith.mulf %30, %32 : vector<2x32xf32>
    %36 = arith.addf %34, %35 : vector<2x32xf32>
    %37 = math.tanh %36 : vector<2x32xf32>
    %38 = arith.mulf %33, %37 : vector<2x32xf32>
    %39 = vector.shape_cast %10 : vector<2x1xi1> to vector<2x1xi1>
    %40 = vector.broadcast %39 : vector<2x1xi1> to vector<2x32xi1>
    %41 = arith.select %40, %38, %5 : vector<2x32xi1>, vector<2x32xf32>
    %42 = vector.shape_cast %10 : vector<2x1xi1> to vector<2x1xi1>
    %43 = vector.broadcast %42 : vector<2x1xi1> to vector<2x32xi1>
    %44 = arith.select %43, %36, %6 : vector<2x32xi1>, vector<2x32xf32>
    %45 = tpu.concatenate %41, %7 in 1 : vector<2x32xf32>, vector<2x32xf32> -> vector<2x64xf32>
    %cst_21 = arith.constant dense<0.000000e+00> : vector<2x128xf32>
    %46 = tpu.matmul %45, %2, %cst_21 {dimension_numbers = #tpu.dot_dimension_numbers<[1], [0], [0], [1], [0, 0, 1, 1], [], []>} : vector<2x64xf32>, vector<64x128xf32>, vector<2x128xf32> -> vector<2x128xf32>
    %47 = vector.broadcast %3 : vector<1x128xf32> to vector<2x128xf32>
    %48 = arith.addf %46, %47 : vector<2x128xf32>
    %49 = arith.negf %48 : vector<2x128xf32>
    %50 = math.exp %49 : vector<2x128xf32>
    %cst_22 = arith.constant 1.000000e+00 : f32
    %51 = vector.broadcast %cst_22 : f32 to vector<2x128xf32>
    %52 = arith.addf %51, %50 : vector<2x128xf32>
    %53 = arith.divf %51, %52 : vector<2x128xf32>
    %54 = math.tanh %48 : vector<2x128xf32>
    %55 = vector.extract_strided_slice %53 {offsets = [0, 0], sizes = [2, 32], strides = [1, 1]} : vector<2x128xf32> to vector<2x32xf32>
    %56 = vector.extract_strided_slice %53 {offsets = [0, 32], sizes = [2, 32], strides = [1, 1]} : vector<2x128xf32> to vector<2x32xf32>
    %57 = vector.extract_strided_slice %54 {offsets = [0, 64], sizes = [2, 32], strides = [1, 1]} : vector<2x128xf32> to vector<2x32xf32>
    %58 = vector.extract_strided_slice %53 {offsets = [0, 96], sizes = [2, 32], strides = [1, 1]} : vector<2x128xf32> to vector<2x32xf32>
    %59 = arith.mulf %56, %8 : vector<2x32xf32>
    %60 = arith.mulf %55, %57 : vector<2x32xf32>
    %61 = arith.addf %59, %60 : vector<2x32xf32>
    %62 = math.tanh %61 : vector<2x32xf32>
    %63 = arith.mulf %58, %62 : vector<2x32xf32>
    %64 = vector.shape_cast %10 : vector<2x1xi1> to vector<2x1xi1>
    %65 = vector.broadcast %64 : vector<2x1xi1> to vector<2x32xi1>
    %66 = arith.select %65, %63, %7 : vector<2x32xi1>, vector<2x32xf32>
    %67 = vector.shape_cast %10 : vector<2x1xi1> to vector<2x1xi1>
    %68 = vector.broadcast %67 : vector<2x1xi1> to vector<2x32xi1>
    %69 = arith.select %68, %61, %8 : vector<2x32xi1>, vector<2x32xf32>
    %cst_23 = arith.constant 0.000000e+00 : f32
    %70 = vector.broadcast %cst_23 : f32 to vector<2x32xf32>
    %71 = vector.shape_cast %10 : vector<2x1xi1> to vector<2x1xi1>
    %72 = vector.broadcast %71 : vector<2x1xi1> to vector<2x32xi1>
    %73 = arith.select %72, %66, %70 : vector<2x32xi1>, vector<2x32xf32>
    %c0_24 = arith.constant 0 : index
    %c0_25 = arith.constant 0 : index
    %c0_26 = arith.constant 0 : index
    %74 = vector.load %arg7[%c0_24, %c0_25, %c0_26] : memref<2x8x32xf32, #tpu.memory_space<vmem>>, vector<2x1x32xf32>
    %75 = vector.shape_cast %74 : vector<2x1x32xf32> to vector<2x32xf32>
    %76 = vector.shape_cast %73 : vector<2x32xf32> to vector<2x1x32xf32>
    tpu.vector_store %arg7[%c0_24, %c0_25, %c0_26], %76 {strides = array<i32>} : memref<2x8x32xf32, #tpu.memory_space<vmem>>, vector<2x1x32xf32>,
    %c1_i32 = arith.constant 1 : i32
    %77 = vector.broadcast %c1_i32 : i32 to vector<2x1xi32>
    %78 = arith.cmpi sgt, %4, %77 : vector<2x1xi32>
    %c0_27 = arith.constant 0 : index
    %c1_28 = arith.constant 1 : index
    %79 = memref.load %arg0[%c0_27, %c1_28] : memref<2x8xi32, #tpu.memory_space<smem>>
    %80 = arith.index_cast %79 : i32 to index
    %c0_29 = arith.constant 0 : index
    %c0_30 = arith.constant 0 : index
    %81 = vector.load %arg2[%80, %c0_29, %c0_30] : memref<20x1x32xf32, #tpu.memory_space<vmem>>, vector<1x1x32xf32>
    %82 = vector.shape_cast %81 : vector<1x1x32xf32> to vector<1x32xf32>
    %c1_31 = arith.constant 1 : index
    %c1_32 = arith.constant 1 : index
    %83 = memref.load %arg0[%c1_31, %c1_32] : memref<2x8xi32, #tpu.memory_space<smem>>
    %84 = arith.index_cast %83 : i32 to index
    %c0_33 = arith.constant 0 : index
    %c0_34 = arith.constant 0 : index
    %85 = vector.load %arg2[%84, %c0_33, %c0_34] : memref<20x1x32xf32, #tpu.memory_space<vmem>>, vector<1x1x32xf32>
    %86 = vector.shape_cast %85 : vector<1x1x32xf32> to vector<1x32xf32>
    %87 = tpu.concatenate %82, %86 in 0 : vector<1x32xf32>, vector<1x32xf32> -> vector<2x32xf32>
    %88 = tpu.concatenate %87, %41 in 1 : vector<2x32xf32>, vector<2x32xf32> -> vector<2x64xf32>
    %cst_35 = arith.constant dense<0.000000e+00> : vector<2x128xf32>
    %89 = tpu.matmul %88, %0, %cst_35 {dimension_numbers = #tpu.dot_dimension_numbers<[1], [0], [0], [1], [0, 0, 1, 1], [], []>} : vector<2x64xf32>, vector<64x128xf32>, vector<2x128xf32> -> vector<2x128xf32>
    %90 = vector.broadcast %1 : vector<1x128xf32> to vector<2x128xf32>
    %91 = arith.addf %89, %90 : vector<2x128xf32>
    %92 = arith.negf %91 : vector<2x128xf32>
    %93 = math.exp %92 : vector<2x128xf32>
    %cst_36 = arith.constant 1.000000e+00 : f32
    %94 = vector.broadcast %cst_36 : f32 to vector<2x128xf32>
    %95 = arith.addf %94, %93 : vector<2x128xf32>
    %96 = arith.divf %94, %95 : vector<2x128xf32>
    %97 = math.tanh %91 : vector<2x128xf32>
    %98 = vector.extract_strided_slice %96 {offsets = [0, 0], sizes = [2, 32], strides = [1, 1]} : vector<2x128xf32> to vector<2x32xf32>
    %99 = vector.extract_strided_slice %96 {offsets = [0, 32], sizes = [2, 32], strides = [1, 1]} : vector<2x128xf32> to vector<2x32xf32>
    %100 = vector.extract_strided_slice %97 {offsets = [0, 64], sizes = [2, 32], strides = [1, 1]} : vector<2x128xf32> to vector<2x32xf32>
    %101 = vector.extract_strided_slice %96 {offsets = [0, 96], sizes = [2, 32], strides = [1, 1]} : vector<2x128xf32> to vector<2x32xf32>
    %102 = arith.mulf %99, %44 : vector<2x32xf32>
    %103 = arith.mulf %98, %100 : vector<2x32xf32>
    %104 = arith.addf %102, %103 : vector<2x32xf32>
    %105 = math.tanh %104 : vector<2x32xf32>
    %106 = arith.mulf %101, %105 : vector<2x32xf32>
    %107 = vector.shape_cast %78 : vector<2x1xi1> to vector<2x1xi1>
    %108 = vector.broadcast %107 : vector<2x1xi1> to vector<2x32xi1>
    %109 = arith.select %108, %106, %41 : vector<2x32xi1>, vector<2x32xf32>
    %110 = vector.shape_cast %78 : vector<2x1xi1> to vector<2x1xi1>
    %111 = vector.broadcast %110 : vector<2x1xi1> to vector<2x32xi1>
    %112 = arith.select %111, %104, %44 : vector<2x32xi1>, vector<2x32xf32>
    %113 = tpu.concatenate %109, %66 in 1 : vector<2x32xf32>, vector<2x32xf32> -> vector<2x64xf32>
    %cst_37 = arith.constant dense<0.000000e+00> : vector<2x128xf32>
    %114 = tpu.matmul %113, %2, %cst_37 {dimension_numbers = #tpu.dot_dimension_numbers<[1], [0], [0], [1], [0, 0, 1, 1], [], []>} : vector<2x64xf32>, vector<64x128xf32>, vector<2x128xf32> -> vector<2x128xf32>
    %115 = vector.broadcast %3 : vector<1x128xf32> to vector<2x128xf32>
    %116 = arith.addf %114, %115 : vector<2x128xf32>
    %117 = arith.negf %116 : vector<2x128xf32>
    %118 = math.exp %117 : vector<2x128xf32>
    %cst_38 = arith.constant 1.000000e+00 : f32
    %119 = vector.broadcast %cst_38 : f32 to vector<2x128xf32>
    %120 = arith.addf %119, %118 : vector<2x128xf32>
    %121 = arith.divf %119, %120 : vector<2x128xf32>
    %122 = math.tanh %116 : vector<2x128xf32>
    %123 = vector.extract_strided_slice %121 {offsets = [0, 0], sizes = [2, 32], strides = [1, 1]} : vector<2x128xf32> to vector<2x32xf32>
    %124 = vector.extract_strided_slice %121 {offsets = [0, 32], sizes = [2, 32], strides = [1, 1]} : vector<2x128xf32> to vector<2x32xf32>
    %125 = vector.extract_strided_slice %122 {offsets = [0, 64], sizes = [2, 32], strides = [1, 1]} : vector<2x128xf32> to vector<2x32xf32>
    %126 = vector.extract_strided_slice %121 {offsets = [0, 96], sizes = [2, 32], strides = [1, 1]} : vector<2x128xf32> to vector<2x32xf32>
    %127 = arith.mulf %124, %69 : vector<2x32xf32>
    %128 = arith.mulf %123, %125 : vector<2x32xf32>
    %129 = arith.addf %127, %128 : vector<2x32xf32>
    %130 = math.tanh %129 : vector<2x32xf32>
    %131 = arith.mulf %126, %130 : vector<2x32xf32>
    %132 = vector.shape_cast %78 : vector<2x1xi1> to vector<2x1xi1>
    %133 = vector.broadcast %132 : vector<2x1xi1> to vector<2x32xi1>
    %134 = arith.select %133, %131, %66 : vector<2x32xi1>, vector<2x32xf32>
    %135 = vector.shape_cast %78 : vector<2x1xi1> to vector<2x1xi1>
    %136 = vector.broadcast %135 : vector<2x1xi1> to vector<2x32xi1>
    %137 = arith.select %136, %129, %69 : vector<2x32xi1>, vector<2x32xf32>
    %cst_39 = arith.constant 0.000000e+00 : f32
    %138 = vector.broadcast %cst_39 : f32 to vector<2x32xf32>
    %139 = vector.shape_cast %78 : vector<2x1xi1> to vector<2x1xi1>
    %140 = vector.broadcast %139 : vector<2x1xi1> to vector<2x32xi1>
    %141 = arith.select %140, %134, %138 : vector<2x32xi1>, vector<2x32xf32>
    %c0_40 = arith.constant 0 : index
    %c1_41 = arith.constant 1 : index
    %c0_42 = arith.constant 0 : index
    %142 = vector.load %arg7[%c0_40, %c1_41, %c0_42] : memref<2x8x32xf32, #tpu.memory_space<vmem>>, vector<2x1x32xf32>
    %143 = vector.shape_cast %142 : vector<2x1x32xf32> to vector<2x32xf32>
    %144 = vector.shape_cast %141 : vector<2x32xf32> to vector<2x1x32xf32>
    tpu.vector_store %arg7[%c0_40, %c1_41, %c0_42], %144 {strides = array<i32>} : memref<2x8x32xf32, #tpu.memory_space<vmem>>, vector<2x1x32xf32>,
    %c2_i32 = arith.constant 2 : i32
    %145 = vector.broadcast %c2_i32 : i32 to vector<2x1xi32>
    %146 = arith.cmpi sgt, %4, %145 : vector<2x1xi32>
    %c0_43 = arith.constant 0 : index
    %c2 = arith.constant 2 : index
    %147 = memref.load %arg0[%c0_43, %c2] : memref<2x8xi32, #tpu.memory_space<smem>>
    %148 = arith.index_cast %147 : i32 to index
    %c0_44 = arith.constant 0 : index
    %c0_45 = arith.constant 0 : index
    %149 = vector.load %arg2[%148, %c0_44, %c0_45] : memref<20x1x32xf32, #tpu.memory_space<vmem>>, vector<1x1x32xf32>
    %150 = vector.shape_cast %149 : vector<1x1x32xf32> to vector<1x32xf32>
    %c1_46 = arith.constant 1 : index
    %c2_47 = arith.constant 2 : index
    %151 = memref.load %arg0[%c1_46, %c2_47] : memref<2x8xi32, #tpu.memory_space<smem>>
    %152 = arith.index_cast %151 : i32 to index
    %c0_48 = arith.constant 0 : index
    %c0_49 = arith.constant 0 : index
    %153 = vector.load %arg2[%152, %c0_48, %c0_49] : memref<20x1x32xf32, #tpu.memory_space<vmem>>, vector<1x1x32xf32>
    %154 = vector.shape_cast %153 : vector<1x1x32xf32> to vector<1x32xf32>
    %155 = tpu.concatenate %150, %154 in 0 : vector<1x32xf32>, vector<1x32xf32> -> vector<2x32xf32>
    %156 = tpu.concatenate %155, %109 in 1 : vector<2x32xf32>, vector<2x32xf32> -> vector<2x64xf32>
    %cst_50 = arith.constant dense<0.000000e+00> : vector<2x128xf32>
    %157 = tpu.matmul %156, %0, %cst_50 {dimension_numbers = #tpu.dot_dimension_numbers<[1], [0], [0], [1], [0, 0, 1, 1], [], []>} : vector<2x64xf32>, vector<64x128xf32>, vector<2x128xf32> -> vector<2x128xf32>
    %158 = vector.broadcast %1 : vector<1x128xf32> to vector<2x128xf32>
    %159 = arith.addf %157, %158 : vector<2x128xf32>
    %160 = arith.negf %159 : vector<2x128xf32>
    %161 = math.exp %160 : vector<2x128xf32>
    %cst_51 = arith.constant 1.000000e+00 : f32
    %162 = vector.broadcast %cst_51 : f32 to vector<2x128xf32>
    %163 = arith.addf %162, %161 : vector<2x128xf32>
    %164 = arith.divf %162, %163 : vector<2x128xf32>
    %165 = math.tanh %159 : vector<2x128xf32>
    %166 = vector.extract_strided_slice %164 {offsets = [0, 0], sizes = [2, 32], strides = [1, 1]} : vector<2x128xf32> to vector<2x32xf32>
    %167 = vector.extract_strided_slice %164 {offsets = [0, 32], sizes = [2, 32], strides = [1, 1]} : vector<2x128xf32> to vector<2x32xf32>
    %168 = vector.extract_strided_slice %165 {offsets = [0, 64], sizes = [2, 32], strides = [1, 1]} : vector<2x128xf32> to vector<2x32xf32>
    %169 = vector.extract_strided_slice %164 {offsets = [0, 96], sizes = [2, 32], strides = [1, 1]} : vector<2x128xf32> to vector<2x32xf32>
    %170 = arith.mulf %167, %112 : vector<2x32xf32>
    %171 = arith.mulf %166, %168 : vector<2x32xf32>
    %172 = arith.addf %170, %171 : vector<2x32xf32>
    %173 = math.tanh %172 : vector<2x32xf32>
    %174 = arith.mulf %169, %173 : vector<2x32xf32>
    %175 = vector.shape_cast %146 : vector<2x1xi1> to vector<2x1xi1>
    %176 = vector.broadcast %175 : vector<2x1xi1> to vector<2x32xi1>
    %177 = arith.select %176, %174, %109 : vector<2x32xi1>, vector<2x32xf32>
    %178 = vector.shape_cast %146 : vector<2x1xi1> to vector<2x1xi1>
    %179 = vector.broadcast %178 : vector<2x1xi1> to vector<2x32xi1>
    %180 = arith.select %179, %172, %112 : vector<2x32xi1>, vector<2x32xf32>
    %181 = tpu.concatenate %177, %134 in 1 : vector<2x32xf32>, vector<2x32xf32> -> vector<2x64xf32>
    %cst_52 = arith.constant dense<0.000000e+00> : vector<2x128xf32>
    %182 = tpu.matmul %181, %2, %cst_52 {dimension_numbers = #tpu.dot_dimension_numbers<[1], [0], [0], [1], [0, 0, 1, 1], [], []>} : vector<2x64xf32>, vector<64x128xf32>, vector<2x128xf32> -> vector<2x128xf32>
    %183 = vector.broadcast %3 : vector<1x128xf32> to vector<2x128xf32>
    %184 = arith.addf %182, %183 : vector<2x128xf32>
    %185 = arith.negf %184 : vector<2x128xf32>
    %186 = math.exp %185 : vector<2x128xf32>
    %cst_53 = arith.constant 1.000000e+00 : f32
    %187 = vector.broadcast %cst_53 : f32 to vector<2x128xf32>
    %188 = arith.addf %187, %186 : vector<2x128xf32>
    %189 = arith.divf %187, %188 : vector<2x128xf32>
    %190 = math.tanh %184 : vector<2x128xf32>
    %191 = vector.extract_strided_slice %189 {offsets = [0, 0], sizes = [2, 32], strides = [1, 1]} : vector<2x128xf32> to vector<2x32xf32>
    %192 = vector.extract_strided_slice %189 {offsets = [0, 32], sizes = [2, 32], strides = [1, 1]} : vector<2x128xf32> to vector<2x32xf32>
    %193 = vector.extract_strided_slice %190 {offsets = [0, 64], sizes = [2, 32], strides = [1, 1]} : vector<2x128xf32> to vector<2x32xf32>
    %194 = vector.extract_strided_slice %189 {offsets = [0, 96], sizes = [2, 32], strides = [1, 1]} : vector<2x128xf32> to vector<2x32xf32>
    %195 = arith.mulf %192, %137 : vector<2x32xf32>
    %196 = arith.mulf %191, %193 : vector<2x32xf32>
    %197 = arith.addf %195, %196 : vector<2x32xf32>
    %198 = math.tanh %197 : vector<2x32xf32>
    %199 = arith.mulf %194, %198 : vector<2x32xf32>
    %200 = vector.shape_cast %146 : vector<2x1xi1> to vector<2x1xi1>
    %201 = vector.broadcast %200 : vector<2x1xi1> to vector<2x32xi1>
    %202 = arith.select %201, %199, %134 : vector<2x32xi1>, vector<2x32xf32>
    %203 = vector.shape_cast %146 : vector<2x1xi1> to vector<2x1xi1>
    %204 = vector.broadcast %203 : vector<2x1xi1> to vector<2x32xi1>
    %205 = arith.select %204, %197, %137 : vector<2x32xi1>, vector<2x32xf32>
    %cst_54 = arith.constant 0.000000e+00 : f32
    %206 = vector.broadcast %cst_54 : f32 to vector<2x32xf32>
    %207 = vector.shape_cast %146 : vector<2x1xi1> to vector<2x1xi1>
    %208 = vector.broadcast %207 : vector<2x1xi1> to vector<2x32xi1>
    %209 = arith.select %208, %202, %206 : vector<2x32xi1>, vector<2x32xf32>
    %c0_55 = arith.constant 0 : index
    %c2_56 = arith.constant 2 : index
    %c0_57 = arith.constant 0 : index
    %210 = vector.load %arg7[%c0_55, %c2_56, %c0_57] : memref<2x8x32xf32, #tpu.memory_space<vmem>>, vector<2x1x32xf32>
    %211 = vector.shape_cast %210 : vector<2x1x32xf32> to vector<2x32xf32>
    %212 = vector.shape_cast %209 : vector<2x32xf32> to vector<2x1x32xf32>
    tpu.vector_store %arg7[%c0_55, %c2_56, %c0_57], %212 {strides = array<i32>} : memref<2x8x32xf32, #tpu.memory_space<vmem>>, vector<2x1x32xf32>,
    %c3_i32 = arith.constant 3 : i32
    %213 = vector.broadcast %c3_i32 : i32 to vector<2x1xi32>
    %214 = arith.cmpi sgt, %4, %213 : vector<2x1xi32>
    %c0_58 = arith.constant 0 : index
    %c3 = arith.constant 3 : index
    %215 = memref.load %arg0[%c0_58, %c3] : memref<2x8xi32, #tpu.memory_space<smem>>
    %216 = arith.index_cast %215 : i32 to index
    %c0_59 = arith.constant 0 : index
    %c0_60 = arith.constant 0 : index
    %217 = vector.load %arg2[%216, %c0_59, %c0_60] : memref<20x1x32xf32, #tpu.memory_space<vmem>>, vector<1x1x32xf32>
    %218 = vector.shape_cast %217 : vector<1x1x32xf32> to vector<1x32xf32>
    %c1_61 = arith.constant 1 : index
    %c3_62 = arith.constant 3 : index
    %219 = memref.load %arg0[%c1_61, %c3_62] : memref<2x8xi32, #tpu.memory_space<smem>>
    %220 = arith.index_cast %219 : i32 to index
    %c0_63 = arith.constant 0 : index
    %c0_64 = arith.constant 0 : index
    %221 = vector.load %arg2[%220, %c0_63, %c0_64] : memref<20x1x32xf32, #tpu.memory_space<vmem>>, vector<1x1x32xf32>
    %222 = vector.shape_cast %221 : vector<1x1x32xf32> to vector<1x32xf32>
    %223 = tpu.concatenate %218, %222 in 0 : vector<1x32xf32>, vector<1x32xf32> -> vector<2x32xf32>
    %224 = tpu.concatenate %223, %177 in 1 : vector<2x32xf32>, vector<2x32xf32> -> vector<2x64xf32>
    %cst_65 = arith.constant dense<0.000000e+00> : vector<2x128xf32>
    %225 = tpu.matmul %224, %0, %cst_65 {dimension_numbers = #tpu.dot_dimension_numbers<[1], [0], [0], [1], [0, 0, 1, 1], [], []>} : vector<2x64xf32>, vector<64x128xf32>, vector<2x128xf32> -> vector<2x128xf32>
    %226 = vector.broadcast %1 : vector<1x128xf32> to vector<2x128xf32>
    %227 = arith.addf %225, %226 : vector<2x128xf32>
    %228 = arith.negf %227 : vector<2x128xf32>
    %229 = math.exp %228 : vector<2x128xf32>
    %cst_66 = arith.constant 1.000000e+00 : f32
    %230 = vector.broadcast %cst_66 : f32 to vector<2x128xf32>
    %231 = arith.addf %230, %229 : vector<2x128xf32>
    %232 = arith.divf %230, %231 : vector<2x128xf32>
    %233 = math.tanh %227 : vector<2x128xf32>
    %234 = vector.extract_strided_slice %232 {offsets = [0, 0], sizes = [2, 32], strides = [1, 1]} : vector<2x128xf32> to vector<2x32xf32>
    %235 = vector.extract_strided_slice %232 {offsets = [0, 32], sizes = [2, 32], strides = [1, 1]} : vector<2x128xf32> to vector<2x32xf32>
    %236 = vector.extract_strided_slice %233 {offsets = [0, 64], sizes = [2, 32], strides = [1, 1]} : vector<2x128xf32> to vector<2x32xf32>
    %237 = vector.extract_strided_slice %232 {offsets = [0, 96], sizes = [2, 32], strides = [1, 1]} : vector<2x128xf32> to vector<2x32xf32>
    %238 = arith.mulf %235, %180 : vector<2x32xf32>
    %239 = arith.mulf %234, %236 : vector<2x32xf32>
    %240 = arith.addf %238, %239 : vector<2x32xf32>
    %241 = math.tanh %240 : vector<2x32xf32>
    %242 = arith.mulf %237, %241 : vector<2x32xf32>
    %243 = vector.shape_cast %214 : vector<2x1xi1> to vector<2x1xi1>
    %244 = vector.broadcast %243 : vector<2x1xi1> to vector<2x32xi1>
    %245 = arith.select %244, %242, %177 : vector<2x32xi1>, vector<2x32xf32>
    %246 = vector.shape_cast %214 : vector<2x1xi1> to vector<2x1xi1>
    %247 = vector.broadcast %246 : vector<2x1xi1> to vector<2x32xi1>
    %248 = arith.select %247, %240, %180 : vector<2x32xi1>, vector<2x32xf32>
    %249 = tpu.concatenate %245, %202 in 1 : vector<2x32xf32>, vector<2x32xf32> -> vector<2x64xf32>
    %cst_67 = arith.constant dense<0.000000e+00> : vector<2x128xf32>
    %250 = tpu.matmul %249, %2, %cst_67 {dimension_numbers = #tpu.dot_dimension_numbers<[1], [0], [0], [1], [0, 0, 1, 1], [], []>} : vector<2x64xf32>, vector<64x128xf32>, vector<2x128xf32> -> vector<2x128xf32>
    %251 = vector.broadcast %3 : vector<1x128xf32> to vector<2x128xf32>
    %252 = arith.addf %250, %251 : vector<2x128xf32>
    %253 = arith.negf %252 : vector<2x128xf32>
    %254 = math.exp %253 : vector<2x128xf32>
    %cst_68 = arith.constant 1.000000e+00 : f32
    %255 = vector.broadcast %cst_68 : f32 to vector<2x128xf32>
    %256 = arith.addf %255, %254 : vector<2x128xf32>
    %257 = arith.divf %255, %256 : vector<2x128xf32>
    %258 = math.tanh %252 : vector<2x128xf32>
    %259 = vector.extract_strided_slice %257 {offsets = [0, 0], sizes = [2, 32], strides = [1, 1]} : vector<2x128xf32> to vector<2x32xf32>
    %260 = vector.extract_strided_slice %257 {offsets = [0, 32], sizes = [2, 32], strides = [1, 1]} : vector<2x128xf32> to vector<2x32xf32>
    %261 = vector.extract_strided_slice %258 {offsets = [0, 64], sizes = [2, 32], strides = [1, 1]} : vector<2x128xf32> to vector<2x32xf32>
    %262 = vector.extract_strided_slice %257 {offsets = [0, 96], sizes = [2, 32], strides = [1, 1]} : vector<2x128xf32> to vector<2x32xf32>
    %263 = arith.mulf %260, %205 : vector<2x32xf32>
    %264 = arith.mulf %259, %261 : vector<2x32xf32>
    %265 = arith.addf %263, %264 : vector<2x32xf32>
    %266 = math.tanh %265 : vector<2x32xf32>
    %267 = arith.mulf %262, %266 : vector<2x32xf32>
    %268 = vector.shape_cast %214 : vector<2x1xi1> to vector<2x1xi1>
    %269 = vector.broadcast %268 : vector<2x1xi1> to vector<2x32xi1>
    %270 = arith.select %269, %267, %202 : vector<2x32xi1>, vector<2x32xf32>
    %271 = vector.shape_cast %214 : vector<2x1xi1> to vector<2x1xi1>
    %272 = vector.broadcast %271 : vector<2x1xi1> to vector<2x32xi1>
    %273 = arith.select %272, %265, %205 : vector<2x32xi1>, vector<2x32xf32>
    %cst_69 = arith.constant 0.000000e+00 : f32
    %274 = vector.broadcast %cst_69 : f32 to vector<2x32xf32>
    %275 = vector.shape_cast %214 : vector<2x1xi1> to vector<2x1xi1>
    %276 = vector.broadcast %275 : vector<2x1xi1> to vector<2x32xi1>
    %277 = arith.select %276, %270, %274 : vector<2x32xi1>, vector<2x32xf32>
    %c0_70 = arith.constant 0 : index
    %c3_71 = arith.constant 3 : index
    %c0_72 = arith.constant 0 : index
    %278 = vector.load %arg7[%c0_70, %c3_71, %c0_72] : memref<2x8x32xf32, #tpu.memory_space<vmem>>, vector<2x1x32xf32>
    %279 = vector.shape_cast %278 : vector<2x1x32xf32> to vector<2x32xf32>
    %280 = vector.shape_cast %277 : vector<2x32xf32> to vector<2x1x32xf32>
    tpu.vector_store %arg7[%c0_70, %c3_71, %c0_72], %280 {strides = array<i32>} : memref<2x8x32xf32, #tpu.memory_space<vmem>>, vector<2x1x32xf32>,
    %c4_i32 = arith.constant 4 : i32
    %281 = vector.broadcast %c4_i32 : i32 to vector<2x1xi32>
    %282 = arith.cmpi sgt, %4, %281 : vector<2x1xi32>
    %c0_73 = arith.constant 0 : index
    %c4 = arith.constant 4 : index
    %283 = memref.load %arg0[%c0_73, %c4] : memref<2x8xi32, #tpu.memory_space<smem>>
    %284 = arith.index_cast %283 : i32 to index
    %c0_74 = arith.constant 0 : index
    %c0_75 = arith.constant 0 : index
    %285 = vector.load %arg2[%284, %c0_74, %c0_75] : memref<20x1x32xf32, #tpu.memory_space<vmem>>, vector<1x1x32xf32>
    %286 = vector.shape_cast %285 : vector<1x1x32xf32> to vector<1x32xf32>
    %c1_76 = arith.constant 1 : index
    %c4_77 = arith.constant 4 : index
    %287 = memref.load %arg0[%c1_76, %c4_77] : memref<2x8xi32, #tpu.memory_space<smem>>
    %288 = arith.index_cast %287 : i32 to index
    %c0_78 = arith.constant 0 : index
    %c0_79 = arith.constant 0 : index
    %289 = vector.load %arg2[%288, %c0_78, %c0_79] : memref<20x1x32xf32, #tpu.memory_space<vmem>>, vector<1x1x32xf32>
    %290 = vector.shape_cast %289 : vector<1x1x32xf32> to vector<1x32xf32>
    %291 = tpu.concatenate %286, %290 in 0 : vector<1x32xf32>, vector<1x32xf32> -> vector<2x32xf32>
    %292 = tpu.concatenate %291, %245 in 1 : vector<2x32xf32>, vector<2x32xf32> -> vector<2x64xf32>
    %cst_80 = arith.constant dense<0.000000e+00> : vector<2x128xf32>
    %293 = tpu.matmul %292, %0, %cst_80 {dimension_numbers = #tpu.dot_dimension_numbers<[1], [0], [0], [1], [0, 0, 1, 1], [], []>} : vector<2x64xf32>, vector<64x128xf32>, vector<2x128xf32> -> vector<2x128xf32>
    %294 = vector.broadcast %1 : vector<1x128xf32> to vector<2x128xf32>
    %295 = arith.addf %293, %294 : vector<2x128xf32>
    %296 = arith.negf %295 : vector<2x128xf32>
    %297 = math.exp %296 : vector<2x128xf32>
    %cst_81 = arith.constant 1.000000e+00 : f32
    %298 = vector.broadcast %cst_81 : f32 to vector<2x128xf32>
    %299 = arith.addf %298, %297 : vector<2x128xf32>
    %300 = arith.divf %298, %299 : vector<2x128xf32>
    %301 = math.tanh %295 : vector<2x128xf32>
    %302 = vector.extract_strided_slice %300 {offsets = [0, 0], sizes = [2, 32], strides = [1, 1]} : vector<2x128xf32> to vector<2x32xf32>
    %303 = vector.extract_strided_slice %300 {offsets = [0, 32], sizes = [2, 32], strides = [1, 1]} : vector<2x128xf32> to vector<2x32xf32>
    %304 = vector.extract_strided_slice %301 {offsets = [0, 64], sizes = [2, 32], strides = [1, 1]} : vector<2x128xf32> to vector<2x32xf32>
    %305 = vector.extract_strided_slice %300 {offsets = [0, 96], sizes = [2, 32], strides = [1, 1]} : vector<2x128xf32> to vector<2x32xf32>
    %306 = arith.mulf %303, %248 : vector<2x32xf32>
    %307 = arith.mulf %302, %304 : vector<2x32xf32>
    %308 = arith.addf %306, %307 : vector<2x32xf32>
    %309 = math.tanh %308 : vector<2x32xf32>
    %310 = arith.mulf %305, %309 : vector<2x32xf32>
    %311 = vector.shape_cast %282 : vector<2x1xi1> to vector<2x1xi1>
    %312 = vector.broadcast %311 : vector<2x1xi1> to vector<2x32xi1>
    %313 = arith.select %312, %310, %245 : vector<2x32xi1>, vector<2x32xf32>
    %314 = vector.shape_cast %282 : vector<2x1xi1> to vector<2x1xi1>
    %315 = vector.broadcast %314 : vector<2x1xi1> to vector<2x32xi1>
    %316 = arith.select %315, %308, %248 : vector<2x32xi1>, vector<2x32xf32>
    %317 = tpu.concatenate %313, %270 in 1 : vector<2x32xf32>, vector<2x32xf32> -> vector<2x64xf32>
    %cst_82 = arith.constant dense<0.000000e+00> : vector<2x128xf32>
    %318 = tpu.matmul %317, %2, %cst_82 {dimension_numbers = #tpu.dot_dimension_numbers<[1], [0], [0], [1], [0, 0, 1, 1], [], []>} : vector<2x64xf32>, vector<64x128xf32>, vector<2x128xf32> -> vector<2x128xf32>
    %319 = vector.broadcast %3 : vector<1x128xf32> to vector<2x128xf32>
    %320 = arith.addf %318, %319 : vector<2x128xf32>
    %321 = arith.negf %320 : vector<2x128xf32>
    %322 = math.exp %321 : vector<2x128xf32>
    %cst_83 = arith.constant 1.000000e+00 : f32
    %323 = vector.broadcast %cst_83 : f32 to vector<2x128xf32>
    %324 = arith.addf %323, %322 : vector<2x128xf32>
    %325 = arith.divf %323, %324 : vector<2x128xf32>
    %326 = math.tanh %320 : vector<2x128xf32>
    %327 = vector.extract_strided_slice %325 {offsets = [0, 0], sizes = [2, 32], strides = [1, 1]} : vector<2x128xf32> to vector<2x32xf32>
    %328 = vector.extract_strided_slice %325 {offsets = [0, 32], sizes = [2, 32], strides = [1, 1]} : vector<2x128xf32> to vector<2x32xf32>
    %329 = vector.extract_strided_slice %326 {offsets = [0, 64], sizes = [2, 32], strides = [1, 1]} : vector<2x128xf32> to vector<2x32xf32>
    %330 = vector.extract_strided_slice %325 {offsets = [0, 96], sizes = [2, 32], strides = [1, 1]} : vector<2x128xf32> to vector<2x32xf32>
    %331 = arith.mulf %328, %273 : vector<2x32xf32>
    %332 = arith.mulf %327, %329 : vector<2x32xf32>
    %333 = arith.addf %331, %332 : vector<2x32xf32>
    %334 = math.tanh %333 : vector<2x32xf32>
    %335 = arith.mulf %330, %334 : vector<2x32xf32>
    %336 = vector.shape_cast %282 : vector<2x1xi1> to vector<2x1xi1>
    %337 = vector.broadcast %336 : vector<2x1xi1> to vector<2x32xi1>
    %338 = arith.select %337, %335, %270 : vector<2x32xi1>, vector<2x32xf32>
    %339 = vector.shape_cast %282 : vector<2x1xi1> to vector<2x1xi1>
    %340 = vector.broadcast %339 : vector<2x1xi1> to vector<2x32xi1>
    %341 = arith.select %340, %333, %273 : vector<2x32xi1>, vector<2x32xf32>
    %cst_84 = arith.constant 0.000000e+00 : f32
    %342 = vector.broadcast %cst_84 : f32 to vector<2x32xf32>
    %343 = vector.shape_cast %282 : vector<2x1xi1> to vector<2x1xi1>
    %344 = vector.broadcast %343 : vector<2x1xi1> to vector<2x32xi1>
    %345 = arith.select %344, %338, %342 : vector<2x32xi1>, vector<2x32xf32>
    %c0_85 = arith.constant 0 : index
    %c4_86 = arith.constant 4 : index
    %c0_87 = arith.constant 0 : index
    %346 = vector.load %arg7[%c0_85, %c4_86, %c0_87] : memref<2x8x32xf32, #tpu.memory_space<vmem>>, vector<2x1x32xf32>
    %347 = vector.shape_cast %346 : vector<2x1x32xf32> to vector<2x32xf32>
    %348 = vector.shape_cast %345 : vector<2x32xf32> to vector<2x1x32xf32>
    tpu.vector_store %arg7[%c0_85, %c4_86, %c0_87], %348 {strides = array<i32>} : memref<2x8x32xf32, #tpu.memory_space<vmem>>, vector<2x1x32xf32>,
    %c5_i32 = arith.constant 5 : i32
    %349 = vector.broadcast %c5_i32 : i32 to vector<2x1xi32>
    %350 = arith.cmpi sgt, %4, %349 : vector<2x1xi32>
    %c0_88 = arith.constant 0 : index
    %c5 = arith.constant 5 : index
    %351 = memref.load %arg0[%c0_88, %c5] : memref<2x8xi32, #tpu.memory_space<smem>>
    %352 = arith.index_cast %351 : i32 to index
    %c0_89 = arith.constant 0 : index
    %c0_90 = arith.constant 0 : index
    %353 = vector.load %arg2[%352, %c0_89, %c0_90] : memref<20x1x32xf32, #tpu.memory_space<vmem>>, vector<1x1x32xf32>
    %354 = vector.shape_cast %353 : vector<1x1x32xf32> to vector<1x32xf32>
    %c1_91 = arith.constant 1 : index
    %c5_92 = arith.constant 5 : index
    %355 = memref.load %arg0[%c1_91, %c5_92] : memref<2x8xi32, #tpu.memory_space<smem>>
    %356 = arith.index_cast %355 : i32 to index
    %c0_93 = arith.constant 0 : index
    %c0_94 = arith.constant 0 : index
    %357 = vector.load %arg2[%356, %c0_93, %c0_94] : memref<20x1x32xf32, #tpu.memory_space<vmem>>, vector<1x1x32xf32>
    %358 = vector.shape_cast %357 : vector<1x1x32xf32> to vector<1x32xf32>
    %359 = tpu.concatenate %354, %358 in 0 : vector<1x32xf32>, vector<1x32xf32> -> vector<2x32xf32>
    %360 = tpu.concatenate %359, %313 in 1 : vector<2x32xf32>, vector<2x32xf32> -> vector<2x64xf32>
    %cst_95 = arith.constant dense<0.000000e+00> : vector<2x128xf32>
    %361 = tpu.matmul %360, %0, %cst_95 {dimension_numbers = #tpu.dot_dimension_numbers<[1], [0], [0], [1], [0, 0, 1, 1], [], []>} : vector<2x64xf32>, vector<64x128xf32>, vector<2x128xf32> -> vector<2x128xf32>
    %362 = vector.broadcast %1 : vector<1x128xf32> to vector<2x128xf32>
    %363 = arith.addf %361, %362 : vector<2x128xf32>
    %364 = arith.negf %363 : vector<2x128xf32>
    %365 = math.exp %364 : vector<2x128xf32>
    %cst_96 = arith.constant 1.000000e+00 : f32
    %366 = vector.broadcast %cst_96 : f32 to vector<2x128xf32>
    %367 = arith.addf %366, %365 : vector<2x128xf32>
    %368 = arith.divf %366, %367 : vector<2x128xf32>
    %369 = math.tanh %363 : vector<2x128xf32>
    %370 = vector.extract_strided_slice %368 {offsets = [0, 0], sizes = [2, 32], strides = [1, 1]} : vector<2x128xf32> to vector<2x32xf32>
    %371 = vector.extract_strided_slice %368 {offsets = [0, 32], sizes = [2, 32], strides = [1, 1]} : vector<2x128xf32> to vector<2x32xf32>
    %372 = vector.extract_strided_slice %369 {offsets = [0, 64], sizes = [2, 32], strides = [1, 1]} : vector<2x128xf32> to vector<2x32xf32>
    %373 = vector.extract_strided_slice %368 {offsets = [0, 96], sizes = [2, 32], strides = [1, 1]} : vector<2x128xf32> to vector<2x32xf32>
    %374 = arith.mulf %371, %316 : vector<2x32xf32>
    %375 = arith.mulf %370, %372 : vector<2x32xf32>
    %376 = arith.addf %374, %375 : vector<2x32xf32>
    %377 = math.tanh %376 : vector<2x32xf32>
    %378 = arith.mulf %373, %377 : vector<2x32xf32>
    %379 = vector.shape_cast %350 : vector<2x1xi1> to vector<2x1xi1>
    %380 = vector.broadcast %379 : vector<2x1xi1> to vector<2x32xi1>
    %381 = arith.select %380, %378, %313 : vector<2x32xi1>, vector<2x32xf32>
    %382 = vector.shape_cast %350 : vector<2x1xi1> to vector<2x1xi1>
    %383 = vector.broadcast %382 : vector<2x1xi1> to vector<2x32xi1>
    %384 = arith.select %383, %376, %316 : vector<2x32xi1>, vector<2x32xf32>
    %385 = tpu.concatenate %381, %338 in 1 : vector<2x32xf32>, vector<2x32xf32> -> vector<2x64xf32>
    %cst_97 = arith.constant dense<0.000000e+00> : vector<2x128xf32>
    %386 = tpu.matmul %385, %2, %cst_97 {dimension_numbers = #tpu.dot_dimension_numbers<[1], [0], [0], [1], [0, 0, 1, 1], [], []>} : vector<2x64xf32>, vector<64x128xf32>, vector<2x128xf32> -> vector<2x128xf32>
    %387 = vector.broadcast %3 : vector<1x128xf32> to vector<2x128xf32>
    %388 = arith.addf %386, %387 : vector<2x128xf32>
    %389 = arith.negf %388 : vector<2x128xf32>
    %390 = math.exp %389 : vector<2x128xf32>
    %cst_98 = arith.constant 1.000000e+00 : f32
    %391 = vector.broadcast %cst_98 : f32 to vector<2x128xf32>
    %392 = arith.addf %391, %390 : vector<2x128xf32>
    %393 = arith.divf %391, %392 : vector<2x128xf32>
    %394 = math.tanh %388 : vector<2x128xf32>
    %395 = vector.extract_strided_slice %393 {offsets = [0, 0], sizes = [2, 32], strides = [1, 1]} : vector<2x128xf32> to vector<2x32xf32>
    %396 = vector.extract_strided_slice %393 {offsets = [0, 32], sizes = [2, 32], strides = [1, 1]} : vector<2x128xf32> to vector<2x32xf32>
    %397 = vector.extract_strided_slice %394 {offsets = [0, 64], sizes = [2, 32], strides = [1, 1]} : vector<2x128xf32> to vector<2x32xf32>
    %398 = vector.extract_strided_slice %393 {offsets = [0, 96], sizes = [2, 32], strides = [1, 1]} : vector<2x128xf32> to vector<2x32xf32>
    %399 = arith.mulf %396, %341 : vector<2x32xf32>
    %400 = arith.mulf %395, %397 : vector<2x32xf32>
    %401 = arith.addf %399, %400 : vector<2x32xf32>
    %402 = math.tanh %401 : vector<2x32xf32>
    %403 = arith.mulf %398, %402 : vector<2x32xf32>
    %404 = vector.shape_cast %350 : vector<2x1xi1> to vector<2x1xi1>
    %405 = vector.broadcast %404 : vector<2x1xi1> to vector<2x32xi1>
    %406 = arith.select %405, %403, %338 : vector<2x32xi1>, vector<2x32xf32>
    %407 = vector.shape_cast %350 : vector<2x1xi1> to vector<2x1xi1>
    %408 = vector.broadcast %407 : vector<2x1xi1> to vector<2x32xi1>
    %409 = arith.select %408, %401, %341 : vector<2x32xi1>, vector<2x32xf32>
    %cst_99 = arith.constant 0.000000e+00 : f32
    %410 = vector.broadcast %cst_99 : f32 to vector<2x32xf32>
    %411 = vector.shape_cast %350 : vector<2x1xi1> to vector<2x1xi1>
    %412 = vector.broadcast %411 : vector<2x1xi1> to vector<2x32xi1>
    %413 = arith.select %412, %406, %410 : vector<2x32xi1>, vector<2x32xf32>
    %c0_100 = arith.constant 0 : index
    %c5_101 = arith.constant 5 : index
    %c0_102 = arith.constant 0 : index
    %414 = vector.load %arg7[%c0_100, %c5_101, %c0_102] : memref<2x8x32xf32, #tpu.memory_space<vmem>>, vector<2x1x32xf32>
    %415 = vector.shape_cast %414 : vector<2x1x32xf32> to vector<2x32xf32>
    %416 = vector.shape_cast %413 : vector<2x32xf32> to vector<2x1x32xf32>
    tpu.vector_store %arg7[%c0_100, %c5_101, %c0_102], %416 {strides = array<i32>} : memref<2x8x32xf32, #tpu.memory_space<vmem>>, vector<2x1x32xf32>,
    %c6_i32 = arith.constant 6 : i32
    %417 = vector.broadcast %c6_i32 : i32 to vector<2x1xi32>
    %418 = arith.cmpi sgt, %4, %417 : vector<2x1xi32>
    %c0_103 = arith.constant 0 : index
    %c6 = arith.constant 6 : index
    %419 = memref.load %arg0[%c0_103, %c6] : memref<2x8xi32, #tpu.memory_space<smem>>
    %420 = arith.index_cast %419 : i32 to index
    %c0_104 = arith.constant 0 : index
    %c0_105 = arith.constant 0 : index
    %421 = vector.load %arg2[%420, %c0_104, %c0_105] : memref<20x1x32xf32, #tpu.memory_space<vmem>>, vector<1x1x32xf32>
    %422 = vector.shape_cast %421 : vector<1x1x32xf32> to vector<1x32xf32>
    %c1_106 = arith.constant 1 : index
    %c6_107 = arith.constant 6 : index
    %423 = memref.load %arg0[%c1_106, %c6_107] : memref<2x8xi32, #tpu.memory_space<smem>>
    %424 = arith.index_cast %423 : i32 to index
    %c0_108 = arith.constant 0 : index
    %c0_109 = arith.constant 0 : index
    %425 = vector.load %arg2[%424, %c0_108, %c0_109] : memref<20x1x32xf32, #tpu.memory_space<vmem>>, vector<1x1x32xf32>
    %426 = vector.shape_cast %425 : vector<1x1x32xf32> to vector<1x32xf32>
    %427 = tpu.concatenate %422, %426 in 0 : vector<1x32xf32>, vector<1x32xf32> -> vector<2x32xf32>
    %428 = tpu.concatenate %427, %381 in 1 : vector<2x32xf32>, vector<2x32xf32> -> vector<2x64xf32>
    %cst_110 = arith.constant dense<0.000000e+00> : vector<2x128xf32>
    %429 = tpu.matmul %428, %0, %cst_110 {dimension_numbers = #tpu.dot_dimension_numbers<[1], [0], [0], [1], [0, 0, 1, 1], [], []>} : vector<2x64xf32>, vector<64x128xf32>, vector<2x128xf32> -> vector<2x128xf32>
    %430 = vector.broadcast %1 : vector<1x128xf32> to vector<2x128xf32>
    %431 = arith.addf %429, %430 : vector<2x128xf32>
    %432 = arith.negf %431 : vector<2x128xf32>
    %433 = math.exp %432 : vector<2x128xf32>
    %cst_111 = arith.constant 1.000000e+00 : f32
    %434 = vector.broadcast %cst_111 : f32 to vector<2x128xf32>
    %435 = arith.addf %434, %433 : vector<2x128xf32>
    %436 = arith.divf %434, %435 : vector<2x128xf32>
    %437 = math.tanh %431 : vector<2x128xf32>
    %438 = vector.extract_strided_slice %436 {offsets = [0, 0], sizes = [2, 32], strides = [1, 1]} : vector<2x128xf32> to vector<2x32xf32>
    %439 = vector.extract_strided_slice %436 {offsets = [0, 32], sizes = [2, 32], strides = [1, 1]} : vector<2x128xf32> to vector<2x32xf32>
    %440 = vector.extract_strided_slice %437 {offsets = [0, 64], sizes = [2, 32], strides = [1, 1]} : vector<2x128xf32> to vector<2x32xf32>
    %441 = vector.extract_strided_slice %436 {offsets = [0, 96], sizes = [2, 32], strides = [1, 1]} : vector<2x128xf32> to vector<2x32xf32>
    %442 = arith.mulf %439, %384 : vector<2x32xf32>
    %443 = arith.mulf %438, %440 : vector<2x32xf32>
    %444 = arith.addf %442, %443 : vector<2x32xf32>
    %445 = math.tanh %444 : vector<2x32xf32>
    %446 = arith.mulf %441, %445 : vector<2x32xf32>
    %447 = vector.shape_cast %418 : vector<2x1xi1> to vector<2x1xi1>
    %448 = vector.broadcast %447 : vector<2x1xi1> to vector<2x32xi1>
    %449 = arith.select %448, %446, %381 : vector<2x32xi1>, vector<2x32xf32>
    %450 = vector.shape_cast %418 : vector<2x1xi1> to vector<2x1xi1>
    %451 = vector.broadcast %450 : vector<2x1xi1> to vector<2x32xi1>
    %452 = arith.select %451, %444, %384 : vector<2x32xi1>, vector<2x32xf32>
    %453 = tpu.concatenate %449, %406 in 1 : vector<2x32xf32>, vector<2x32xf32> -> vector<2x64xf32>
    %cst_112 = arith.constant dense<0.000000e+00> : vector<2x128xf32>
    %454 = tpu.matmul %453, %2, %cst_112 {dimension_numbers = #tpu.dot_dimension_numbers<[1], [0], [0], [1], [0, 0, 1, 1], [], []>} : vector<2x64xf32>, vector<64x128xf32>, vector<2x128xf32> -> vector<2x128xf32>
    %455 = vector.broadcast %3 : vector<1x128xf32> to vector<2x128xf32>
    %456 = arith.addf %454, %455 : vector<2x128xf32>
    %457 = arith.negf %456 : vector<2x128xf32>
    %458 = math.exp %457 : vector<2x128xf32>
    %cst_113 = arith.constant 1.000000e+00 : f32
    %459 = vector.broadcast %cst_113 : f32 to vector<2x128xf32>
    %460 = arith.addf %459, %458 : vector<2x128xf32>
    %461 = arith.divf %459, %460 : vector<2x128xf32>
    %462 = math.tanh %456 : vector<2x128xf32>
    %463 = vector.extract_strided_slice %461 {offsets = [0, 0], sizes = [2, 32], strides = [1, 1]} : vector<2x128xf32> to vector<2x32xf32>
    %464 = vector.extract_strided_slice %461 {offsets = [0, 32], sizes = [2, 32], strides = [1, 1]} : vector<2x128xf32> to vector<2x32xf32>
    %465 = vector.extract_strided_slice %462 {offsets = [0, 64], sizes = [2, 32], strides = [1, 1]} : vector<2x128xf32> to vector<2x32xf32>
    %466 = vector.extract_strided_slice %461 {offsets = [0, 96], sizes = [2, 32], strides = [1, 1]} : vector<2x128xf32> to vector<2x32xf32>
    %467 = arith.mulf %464, %409 : vector<2x32xf32>
    %468 = arith.mulf %463, %465 : vector<2x32xf32>
    %469 = arith.addf %467, %468 : vector<2x32xf32>
    %470 = math.tanh %469 : vector<2x32xf32>
    %471 = arith.mulf %466, %470 : vector<2x32xf32>
    %472 = vector.shape_cast %418 : vector<2x1xi1> to vector<2x1xi1>
    %473 = vector.broadcast %472 : vector<2x1xi1> to vector<2x32xi1>
    %474 = arith.select %473, %471, %406 : vector<2x32xi1>, vector<2x32xf32>
    %475 = vector.shape_cast %418 : vector<2x1xi1> to vector<2x1xi1>
    %476 = vector.broadcast %475 : vector<2x1xi1> to vector<2x32xi1>
    %477 = arith.select %476, %469, %409 : vector<2x32xi1>, vector<2x32xf32>
    %cst_114 = arith.constant 0.000000e+00 : f32
    %478 = vector.broadcast %cst_114 : f32 to vector<2x32xf32>
    %479 = vector.shape_cast %418 : vector<2x1xi1> to vector<2x1xi1>
    %480 = vector.broadcast %479 : vector<2x1xi1> to vector<2x32xi1>
    %481 = arith.select %480, %474, %478 : vector<2x32xi1>, vector<2x32xf32>
    %c0_115 = arith.constant 0 : index
    %c6_116 = arith.constant 6 : index
    %c0_117 = arith.constant 0 : index
    %482 = vector.load %arg7[%c0_115, %c6_116, %c0_117] : memref<2x8x32xf32, #tpu.memory_space<vmem>>, vector<2x1x32xf32>
    %483 = vector.shape_cast %482 : vector<2x1x32xf32> to vector<2x32xf32>
    %484 = vector.shape_cast %481 : vector<2x32xf32> to vector<2x1x32xf32>
    tpu.vector_store %arg7[%c0_115, %c6_116, %c0_117], %484 {strides = array<i32>} : memref<2x8x32xf32, #tpu.memory_space<vmem>>, vector<2x1x32xf32>,
    %c7_i32 = arith.constant 7 : i32
    %485 = vector.broadcast %c7_i32 : i32 to vector<2x1xi32>
    %486 = arith.cmpi sgt, %4, %485 : vector<2x1xi32>
    %c0_118 = arith.constant 0 : index
    %c7 = arith.constant 7 : index
    %487 = memref.load %arg0[%c0_118, %c7] : memref<2x8xi32, #tpu.memory_space<smem>>
    %488 = arith.index_cast %487 : i32 to index
    %c0_119 = arith.constant 0 : index
    %c0_120 = arith.constant 0 : index
    %489 = vector.load %arg2[%488, %c0_119, %c0_120] : memref<20x1x32xf32, #tpu.memory_space<vmem>>, vector<1x1x32xf32>
    %490 = vector.shape_cast %489 : vector<1x1x32xf32> to vector<1x32xf32>
    %c1_121 = arith.constant 1 : index
    %c7_122 = arith.constant 7 : index
    %491 = memref.load %arg0[%c1_121, %c7_122] : memref<2x8xi32, #tpu.memory_space<smem>>
    %492 = arith.index_cast %491 : i32 to index
    %c0_123 = arith.constant 0 : index
    %c0_124 = arith.constant 0 : index
    %493 = vector.load %arg2[%492, %c0_123, %c0_124] : memref<20x1x32xf32, #tpu.memory_space<vmem>>, vector<1x1x32xf32>
    %494 = vector.shape_cast %493 : vector<1x1x32xf32> to vector<1x32xf32>
    %495 = tpu.concatenate %490, %494 in 0 : vector<1x32xf32>, vector<1x32xf32> -> vector<2x32xf32>
    %496 = tpu.concatenate %495, %449 in 1 : vector<2x32xf32>, vector<2x32xf32> -> vector<2x64xf32>
    %cst_125 = arith.constant dense<0.000000e+00> : vector<2x128xf32>
    %497 = tpu.matmul %496, %0, %cst_125 {dimension_numbers = #tpu.dot_dimension_numbers<[1], [0], [0], [1], [0, 0, 1, 1], [], []>} : vector<2x64xf32>, vector<64x128xf32>, vector<2x128xf32> -> vector<2x128xf32>
    %498 = vector.broadcast %1 : vector<1x128xf32> to vector<2x128xf32>
    %499 = arith.addf %497, %498 : vector<2x128xf32>
    %500 = arith.negf %499 : vector<2x128xf32>
    %501 = math.exp %500 : vector<2x128xf32>
    %cst_126 = arith.constant 1.000000e+00 : f32
    %502 = vector.broadcast %cst_126 : f32 to vector<2x128xf32>
    %503 = arith.addf %502, %501 : vector<2x128xf32>
    %504 = arith.divf %502, %503 : vector<2x128xf32>
    %505 = math.tanh %499 : vector<2x128xf32>
    %506 = vector.extract_strided_slice %504 {offsets = [0, 0], sizes = [2, 32], strides = [1, 1]} : vector<2x128xf32> to vector<2x32xf32>
    %507 = vector.extract_strided_slice %504 {offsets = [0, 32], sizes = [2, 32], strides = [1, 1]} : vector<2x128xf32> to vector<2x32xf32>
    %508 = vector.extract_strided_slice %505 {offsets = [0, 64], sizes = [2, 32], strides = [1, 1]} : vector<2x128xf32> to vector<2x32xf32>
    %509 = vector.extract_strided_slice %504 {offsets = [0, 96], sizes = [2, 32], strides = [1, 1]} : vector<2x128xf32> to vector<2x32xf32>
    %510 = arith.mulf %507, %452 : vector<2x32xf32>
    %511 = arith.mulf %506, %508 : vector<2x32xf32>
    %512 = arith.addf %510, %511 : vector<2x32xf32>
    %513 = math.tanh %512 : vector<2x32xf32>
    %514 = arith.mulf %509, %513 : vector<2x32xf32>
    %515 = vector.shape_cast %486 : vector<2x1xi1> to vector<2x1xi1>
    %516 = vector.broadcast %515 : vector<2x1xi1> to vector<2x32xi1>
    %517 = arith.select %516, %514, %449 : vector<2x32xi1>, vector<2x32xf32>
    %518 = vector.shape_cast %486 : vector<2x1xi1> to vector<2x1xi1>
    %519 = vector.broadcast %518 : vector<2x1xi1> to vector<2x32xi1>
    %520 = arith.select %519, %512, %452 : vector<2x32xi1>, vector<2x32xf32>
    %521 = tpu.concatenate %517, %474 in 1 : vector<2x32xf32>, vector<2x32xf32> -> vector<2x64xf32>
    %cst_127 = arith.constant dense<0.000000e+00> : vector<2x128xf32>
    %522 = tpu.matmul %521, %2, %cst_127 {dimension_numbers = #tpu.dot_dimension_numbers<[1], [0], [0], [1], [0, 0, 1, 1], [], []>} : vector<2x64xf32>, vector<64x128xf32>, vector<2x128xf32> -> vector<2x128xf32>
    %523 = vector.broadcast %3 : vector<1x128xf32> to vector<2x128xf32>
    %524 = arith.addf %522, %523 : vector<2x128xf32>
    %525 = arith.negf %524 : vector<2x128xf32>
    %526 = math.exp %525 : vector<2x128xf32>
    %cst_128 = arith.constant 1.000000e+00 : f32
    %527 = vector.broadcast %cst_128 : f32 to vector<2x128xf32>
    %528 = arith.addf %527, %526 : vector<2x128xf32>
    %529 = arith.divf %527, %528 : vector<2x128xf32>
    %530 = math.tanh %524 : vector<2x128xf32>
    %531 = vector.extract_strided_slice %529 {offsets = [0, 0], sizes = [2, 32], strides = [1, 1]} : vector<2x128xf32> to vector<2x32xf32>
    %532 = vector.extract_strided_slice %529 {offsets = [0, 32], sizes = [2, 32], strides = [1, 1]} : vector<2x128xf32> to vector<2x32xf32>
    %533 = vector.extract_strided_slice %530 {offsets = [0, 64], sizes = [2, 32], strides = [1, 1]} : vector<2x128xf32> to vector<2x32xf32>
    %534 = vector.extract_strided_slice %529 {offsets = [0, 96], sizes = [2, 32], strides = [1, 1]} : vector<2x128xf32> to vector<2x32xf32>
    %535 = arith.mulf %532, %477 : vector<2x32xf32>
    %536 = arith.mulf %531, %533 : vector<2x32xf32>
    %537 = arith.addf %535, %536 : vector<2x32xf32>
    %538 = math.tanh %537 : vector<2x32xf32>
    %539 = arith.mulf %534, %538 : vector<2x32xf32>
    %540 = vector.shape_cast %486 : vector<2x1xi1> to vector<2x1xi1>
    %541 = vector.broadcast %540 : vector<2x1xi1> to vector<2x32xi1>
    %542 = arith.select %541, %539, %474 : vector<2x32xi1>, vector<2x32xf32>
    %543 = vector.shape_cast %486 : vector<2x1xi1> to vector<2x1xi1>
    %544 = vector.broadcast %543 : vector<2x1xi1> to vector<2x32xi1>
    %545 = arith.select %544, %537, %477 : vector<2x32xi1>, vector<2x32xf32>
    %cst_129 = arith.constant 0.000000e+00 : f32
    %546 = vector.broadcast %cst_129 : f32 to vector<2x32xf32>
    %547 = vector.shape_cast %486 : vector<2x1xi1> to vector<2x1xi1>
    %548 = vector.broadcast %547 : vector<2x1xi1> to vector<2x32xi1>
    %549 = arith.select %548, %542, %546 : vector<2x32xi1>, vector<2x32xf32>
    %c0_130 = arith.constant 0 : index
    %c7_131 = arith.constant 7 : index
    %c0_132 = arith.constant 0 : index
    %550 = vector.load %arg7[%c0_130, %c7_131, %c0_132] : memref<2x8x32xf32, #tpu.memory_space<vmem>>, vector<2x1x32xf32>
    %551 = vector.shape_cast %550 : vector<2x1x32xf32> to vector<2x32xf32>
    %552 = vector.shape_cast %549 : vector<2x32xf32> to vector<2x1x32xf32>
    tpu.vector_store %arg7[%c0_130, %c7_131, %c0_132], %552 {strides = array<i32>} : memref<2x8x32xf32, #tpu.memory_space<vmem>>, vector<2x1x32xf32>,
    %c0_133 = arith.constant 0 : index
    %c0_134 = arith.constant 0 : index
    %c0_135 = arith.constant 0 : index
    %553 = vector.load %arg8[%c0_133, %c0_134, %c0_135] : memref<2x2x32xf32, #tpu.memory_space<vmem>>, vector<1x2x32xf32>
    %554 = vector.shape_cast %553 : vector<1x2x32xf32> to vector<2x32xf32>
    %555 = vector.shape_cast %517 : vector<2x32xf32> to vector<1x2x32xf32>
    tpu.vector_store %arg8[%c0_133, %c0_134, %c0_135], %555 {strides = array<i32>} : memref<2x2x32xf32, #tpu.memory_space<vmem>>, vector<1x2x32xf32>,
    %c1_136 = arith.constant 1 : index
    %c0_137 = arith.constant 0 : index
    %c0_138 = arith.constant 0 : index
    %556 = vector.load %arg8[%c1_136, %c0_137, %c0_138] : memref<2x2x32xf32, #tpu.memory_space<vmem>>, vector<1x2x32xf32>
    %557 = vector.shape_cast %556 : vector<1x2x32xf32> to vector<2x32xf32>
    %558 = vector.shape_cast %542 : vector<2x32xf32> to vector<1x2x32xf32>
    tpu.vector_store %arg8[%c1_136, %c0_137, %c0_138], %558 {strides = array<i32>} : memref<2x2x32xf32, #tpu.memory_space<vmem>>, vector<1x2x32xf32>,
    %c0_139 = arith.constant 0 : index
    %c0_140 = arith.constant 0 : index
    %c0_141 = arith.constant 0 : index
    %559 = vector.load %arg9[%c0_139, %c0_140, %c0_141] : memref<2x2x32xf32, #tpu.memory_space<vmem>>, vector<1x2x32xf32>
    %560 = vector.shape_cast %559 : vector<1x2x32xf32> to vector<2x32xf32>
    %561 = vector.shape_cast %520 : vector<2x32xf32> to vector<1x2x32xf32>
    tpu.vector_store %arg9[%c0_139, %c0_140, %c0_141], %561 {strides = array<i32>} : memref<2x2x32xf32, #tpu.memory_space<vmem>>, vector<1x2x32xf32>,
    %c1_142 = arith.constant 1 : index
    %c0_143 = arith.constant 0 : index
    %c0_144 = arith.constant 0 : index
    %562 = vector.load %arg9[%c1_142, %c0_143, %c0_144] : memref<2x2x32xf32, #tpu.memory_space<vmem>>, vector<1x2x32xf32>
    %563 = vector.shape_cast %562 : vector<1x2x32xf32> to vector<2x32xf32>
    %564 = vector.shape_cast %545 : vector<2x32xf32> to vector<1x2x32xf32>
    tpu.vector_store %arg9[%c1_142, %c0_143, %c0_144], %564 {strides = array<i32>} : memref<2x2x32xf32, #tpu.memory_space<vmem>>, vector<1x2x32xf32>,
    return
  }
}

</mosaic_0001>

<llo_original>
// kernel: encoder_forward.1
$region0: #{encoder_forward.1}
  #allocation0 [shape = 'u32[]', space=smem, size = 0x4, offset = 0x4, fixed_abs, tag = 'smem constant byte address 0x4 - core index']
  #allocation1 [shape = 'u32[144,128]{1,0:T(1,128)}', space=vmem, size = 0x12000, scoped, tag = 'internal scratch']
  %s0 = inlined_call_operand.vmem [shape: s32[2,8], index: 0, kind: input, shape index: {}]
  %s1 = inlined_call_operand.vmem [shape: s32[2,1], index: 1, kind: input, shape index: {}]
  %s2 = inlined_call_operand.vmem [shape: f32[20,1,32], index: 2, kind: input, shape index: {}]
  %s3 = inlined_call_operand.vmem [shape: f32[64,128], index: 3, kind: input, shape index: {}]
  %s4 = inlined_call_operand.vmem [shape: f32[1,128], index: 4, kind: input, shape index: {}]
  %s5 = inlined_call_operand.vmem [shape: f32[64,128], index: 5, kind: input, shape index: {}]
  %s6 = inlined_call_operand.vmem [shape: f32[1,128], index: 6, kind: input, shape index: {}]
  %s7 = inlined_call_operand.hbm [shape: f32[2,8,32], index: 7, kind: output, shape index: {0}]
  %s8 = inlined_call_operand.hbm [shape: f32[2,2,32], index: 8, kind: output, shape index: {1}]
  %s9 = inlined_call_operand.hbm [shape: f32[2,2,32], index: 9, kind: output, shape index: {2}]
  %10 = xla_tuple %s7, %s8, %s9
  %s11 = sld [smem:[#allocation0]]
  $region58: #{encoder_forward.1} parent=0
    _
  %s13 = ssub.s32 1, %s11
  %s14 = scalar_select 0, %s13, %s11
  $region1: #{encoder_forward.1} parent=0
    #allocation2 [shape = 'u8[1024]{0}', space=smem, size = 0x400, scoped, tag = 'input window, operand 0, single buffered']
    #allocation3 [shape = 's32[1]{0}', space=sflag, size = 0x4, scoped, tag = 'scoped memory for encoder_forward.1']
    #allocation4 [shape = 's32[1]{0}', space=sflag, size = 0x4, scoped, tag = 'scoped memory for encoder_forward.1']
    #allocation5 [shape = 'u8[8192]{0}', space=vmem, size = 0x2000, scoped, tag = 'output window, operand 0, single buffered']
    #allocation6 [shape = 'u8[2048]{0}', space=vmem, size = 0x800, scoped, tag = 'output window, operand 1, single buffered']
    #allocation7 [shape = 's32[1]{0}', space=sflag, size = 0x4, scoped, tag = 'scoped memory for encoder_forward.1']
    #allocation8 [shape = 'u8[2048]{0}', space=vmem, size = 0x800, scoped, tag = 'output window, operand 2, single buffered']
    %15 = vsyncpa [#allocation4], 0
    %16 = vsyncpa [#allocation3], 0
    %17 = vsyncpa [#allocation7], 0
    // Predicated region
    $region2: #{encoder_forward.1} parent=1 // pred_check
      _
    $region3: #{encoder_forward.1} parent=1 // pred_check_branch
      %19 = sbr.rel (0) target = $region5
    $region4: #{encoder_forward.1} parent=1 // pred_region
      %s21 = ssub.s32 32, 32
      %22 = vsyncadd [#allocation4], %s21
      %s24 = sshll.u32 %s0, 4
      %s25 = int_to_ptr.vmem [resolvable:$true] %s24
      %27 = dma.vmem_to_smem %s25, 32, [#allocation2], [#allocation4]
    $region5: #{encoder_forward.1} parent=1 // pred_fallthru
      _
    // Predicated region
    $region6: #{encoder_forward.1} parent=1 // pred_check
      _
    $region7: #{encoder_forward.1} parent=1 // pred_check_branch
      %29 = sbr.rel (0) target = $region9
    $region8: #{encoder_forward.1} parent=1 // pred_region
      _
    $region9: #{encoder_forward.1} parent=1 // pred_fallthru
      _
    // Predicated region
    $region10: #{encoder_forward.1} parent=1 // pred_check
      _
    $region11: #{encoder_forward.1} parent=1 // pred_check_branch
      %31 = sbr.rel (0) target = $region13
    $region12: #{encoder_forward.1} parent=1 // pred_region
      _
    $region13: #{encoder_forward.1} parent=1 // pred_fallthru
      _
    // Predicated region
    $region14: #{encoder_forward.1} parent=1 // pred_check
      _
    $region15: #{encoder_forward.1} parent=1 // pred_check_branch
      %33 = sbr.rel (0) target = $region17
    $region16: #{encoder_forward.1} parent=1 // pred_region
      _
    $region17: #{encoder_forward.1} parent=1 // pred_fallthru
      _
    // Predicated region
    $region18: #{encoder_forward.1} parent=1 // pred_check
      _
    $region19: #{encoder_forward.1} parent=1 // pred_check_branch
      %35 = sbr.rel (0) target = $region21
    $region20: #{encoder_forward.1} parent=1 // pred_region
      _
    $region21: #{encoder_forward.1} parent=1 // pred_fallthru
      _
    // Predicated region
    $region22: #{encoder_forward.1} parent=1 // pred_check
      _
    $region23: #{encoder_forward.1} parent=1 // pred_check_branch
      %37 = sbr.rel (0) target = $region25
    $region24: #{encoder_forward.1} parent=1 // pred_region
      _
    $region25: #{encoder_forward.1} parent=1 // pred_fallthru
      _
    // Predicated region
    $region26: #{encoder_forward.1} parent=1 // pred_check
      _
    $region27: #{encoder_forward.1} parent=1 // pred_check_branch
      %39 = sbr.rel (0) target = $region29
    $region28: #{encoder_forward.1} parent=1 // pred_region
      _
    $region29: #{encoder_forward.1} parent=1 // pred_fallthru
      _
    // Predicated region
    $region30: #{encoder_forward.1} parent=1 // pred_check
      _
    $region31: #{encoder_forward.1} parent=1 // pred_check_branch
      %41 = sbr.rel (0) target = $region33
    $region32: #{encoder_forward.1} parent=1 // pred_region
      %42 = dma.done [#allocation4], 32
    $region33: #{encoder_forward.1} parent=1 // pred_fallthru
      _
    %43 = sfence
    %v44 = vld [vmem:[%s3] sm:$0xff]
    %v45 = vld [vmem:[%s3 + $0x8] sm:$0xff]
    %v46 = vld [vmem:[%s3 + $0x10] sm:$0xff]
    %v47 = vld [vmem:[%s3 + $0x18] sm:$0xff]
    %v48 = vld [vmem:[%s3 + $0x20] sm:$0xff]
    %v49 = vld [vmem:[%s3 + $0x28] sm:$0xff]
    %v50 = vld [vmem:[%s3 + $0x30] sm:$0xff]
    %v51 = vld [vmem:[%s3 + $0x38] sm:$0xff]
    %v52 = vld [vmem:[%s4] sm:$0x1]
    %v53 = vld [vmem:[%s5] sm:$0xff]
    %v54 = vld [vmem:[%s5 + $0x8] sm:$0xff]
    %v55 = vld [vmem:[%s5 + $0x10] sm:$0xff]
    %v56 = vld [vmem:[%s5 + $0x18] sm:$0xff]
    %v57 = vld [vmem:[%s5 + $0x20] sm:$0xff]
    %v58 = vld [vmem:[%s5 + $0x28] sm:$0xff]
    %v59 = vld [vmem:[%s5 + $0x30] sm:$0xff]
    %v60 = vld [vmem:[%s5 + $0x38] sm:$0xff]
    %v61 = vld [vmem:[%s6] sm:$0x1]
    %v62 = vld [vmem:[%s1] sm:$0x3]
    %vm63 = vcmp.gt.s32.totalorder %v62, 0
    %s64 = sld [smem:[#allocation2]]
    %s65 = scalar_lea.vmem %s2, %s64
    %v66 = vld [vmem:[%s65] sm:$0x1]
    %s67 = sld [smem:[#allocation2 + $0x80]]
    %s68 = scalar_lea.vmem %s2, %s67
    %v69 = vld [vmem:[%s68] sm:$0x1]
    %v71 = vlaneseq
    %v72 = vshrl.u32 %v71, 7
    %v73 = vsub.s32 0, %v72
    %v74 = vrot.slane %v69, %v73
    %vm76 = vcmask 1040384
    %v77 = vsel %vm76, %v66, %v74
    %vm78 = vcmask 261120
    %v79 = vsel %vm78, %v77, 0.0
    %v81 = vlaneseq
    %v82 = vshrl.u32 %v81, 7
    %v83 = vsub.s32 0, %v82
    %v84 = vrot.slane %v52, %v83
    %vm86 = vcmask 523264
    %v88 = vsel %vm86, %v79, 0
    %90 = vmatprep.subr.mxu0 0.0
    %91 = vmatpush1.msra.mxu0 %v44
    %92 = vmatprep.subr.mxu0 0.0
    %93 = vmatpush1.msra.mxu0 %v45
    %94 = vmatprep.subr.mxu0 0.0
    %95 = vmatpush1.msra.mxu0 %v46
    %96 = vmatprep.subr.mxu0 0.0
    %97 = vmatpush1.msra.mxu0 %v47
    %98 = vmatprep.subr.mxu0 0.0
    %99 = vmatpush1.msra.mxu0 %v48
    %100 = vmatprep.subr.mxu0 0.0
    %101 = vmatpush1.msra.mxu0 %v49
    %102 = vmatprep.subr.mxu0 0.0
    %103 = vmatpush1.msra.mxu0 %v50
    %104 = vmatprep.subr.mxu0 0.0
    %105 = vmatpush1.msra.mxu0 %v51
    %106 = vmatprep.subr.mxu0 0.0
    %107 = vmatpush1.msra.mxu0 0.0
    %108 = vmatprep.subr.mxu0 0.0
    %109 = vmatpush1.msra.mxu0 0.0
    %110 = vmatprep.subr.mxu0 0.0
    %111 = vmatpush1.msra.mxu0 0.0
    %112 = vmatprep.subr.mxu0 0.0
    %113 = vmatpush1.msra.mxu0 0.0
    %114 = vmatprep.subr.mxu0 0.0
    %115 = vmatpush1.msra.mxu0 0.0
    %116 = vmatprep.subr.mxu0 0.0
    %117 = vmatpush1.msra.mxu0 0.0
    %118 = vmatprep.subr.mxu0 0.0
    %119 = vmatpush1.msra.mxu0 0.0
    %120 = vmatprep.subr.mxu0 0.0
    %121 = vmatpush1.msra.mxu0 0.0
    %122 = vmatprep.subr.mxu0 0.0
    %123 = vmatpush1.msra.mxu0 0.0
    %124 = vmatprep.subr.mxu0 0.0
    %125 = vmatpush1.msra.mxu0 0.0
    %126 = vmatprep.subr.mxu0 0.0
    %127 = vmatpush1.msra.mxu0 0.0
    %128 = vmatprep.subr.mxu0 0.0
    %129 = vmatpush1.msra.mxu0 0.0
    %130 = vmatprep.subr.mxu0 0.0
    %131 = vmatpush1.msra.mxu0 0.0
    %132 = vmatprep.subr.mxu0 0.0
    %133 = vmatpush1.msra.mxu0 0.0
    %134 = vmatprep.subr.mxu0 0.0
    %135 = vmatpush1.msra.mxu0 0.0
    %136 = vmatprep.subr.mxu0 0.0
    %137 = vmatpush1.msra.mxu0 0.0
    %138 = vmatprep.subr.mxu0 0.0
    %139 = vmatpush1.msra.mxu0 0.0
    %140 = vmatprep.subr.mxu0 0.0
    %141 = vmatpush1.msra.mxu0 0.0
    %142 = vmatprep.subr.mxu0 0.0
    %143 = vmatpush1.msra.mxu0 0.0
    %144 = vmatprep.subr.mxu0 0.0
    %145 = vmatpush1.msra.mxu0 0.0
    %146 = vmatprep.subr.mxu0 0.0
    %147 = vmatpush1.msra.mxu0 0.0
    %148 = vmatprep.subr.mxu0 0.0
    %149 = vmatpush1.msra.mxu0 0.0
    %150 = vmatprep.subr.mxu0 0.0
    %151 = vmatpush1.msra.mxu0 0.0
    %152 = vmatprep.subr.mxu0 0.0
    %153 = vmatpush1.msra.mxu0 0.0
    %154 = vmatprep.mubr.f32.mxu0 0.0
    %155 = vmatmul.mubr.f32.gmra.mrb[0].mxu0 %v88
    %v156 = vpop.f32.mrb[0].mxu0
    %v157 = vadd.f32 %v84, %v156
    %v158 = vpop.f32.mrb[0].mxu0
    %159 = vdwg.mxu0
    %v160 = vxor.u32 %v157, 2147483648
    %v161 = vmul.f32 %v160, 1.442695
    %v162 = vpow.pop %v161
    %v163 = vadd.f32 %v162, 1.0
    %v164 = vrcp.pop %v163
    %v165 = vmul.f32 1.0, %v164
    %v166 = vtanh.pop %v157
    %v167 = vmul.f32 %v165, 0.0
    %169 = vrot.lane.b32.xlu0 %v166, 64
    %v170 = vpop.permute.xlu0 %169
    %v172 = vmul.f32 %v165, %v170
    %174 = vrot.lane.b32.xlu0 %v172, 32
    %v175 = vpop.permute.xlu0 %174
    %v177 = vadd.f32 %v167, %v175
    %v178 = vtanh.pop %v177
    %180 = vrot.lane.b32.xlu0 %v178, 64
    %v181 = vpop.permute.xlu0 %180
    %v183 = vmul.f32 %v165, %v181
    %v184 = vsel %vm63, 1, 0
    %185 = vset.pattern.permute.xlu0 0
    %186 = vperm.xlu0 %185, %v184
    %v187 = vpop.permute.xlu0 %186
    %vm188 = vcmp.eq.s32.totalorder %v187, 1
    %v189 = vsel %vm188, %v183, 0.0
    %v190 = vsel %vm188, %v177, 0.0
    %192 = vrot.lane.b32.xlu0 %v189, 32
    %v193 = vpop.permute.xlu0 %192
    %v195 = vsel %vm78, %v193, 0.0
    %v197 = vlaneseq
    %v198 = vshrl.u32 %v197, 7
    %v199 = vsub.s32 0, %v198
    %v200 = vrot.slane %v61, %v199
    %v203 = vsel %vm86, %v195, 0
    %205 = vmatprep.subr.mxu0 0.0
    %206 = vmatpush1.msra.mxu0 %v53
    %207 = vmatprep.subr.mxu0 0.0
    %208 = vmatpush1.msra.mxu0 %v54
    %209 = vmatprep.subr.mxu0 0.0
    %210 = vmatpush1.msra.mxu0 %v55
    %211 = vmatprep.subr.mxu0 0.0
    %212 = vmatpush1.msra.mxu0 %v56
    %213 = vmatprep.subr.mxu0 0.0
    %214 = vmatpush1.msra.mxu0 %v57
    %215 = vmatprep.subr.mxu0 0.0
    %216 = vmatpush1.msra.mxu0 %v58
    %217 = vmatprep.subr.mxu0 0.0
    %218 = vmatpush1.msra.mxu0 %v59
    %219 = vmatprep.subr.mxu0 0.0
    %220 = vmatpush1.msra.mxu0 %v60
    %221 = vmatprep.subr.mxu0 0.0
    %222 = vmatpush1.msra.mxu0 0.0
    %223 = vmatprep.subr.mxu0 0.0
    %224 = vmatpush1.msra.mxu0 0.0
    %225 = vmatprep.subr.mxu0 0.0
    %226 = vmatpush1.msra.mxu0 0.0
    %227 = vmatprep.subr.mxu0 0.0
    %228 = vmatpush1.msra.mxu0 0.0
    %229 = vmatprep.subr.mxu0 0.0
    %230 = vmatpush1.msra.mxu0 0.0
    %231 = vmatprep.subr.mxu0 0.0
    %232 = vmatpush1.msra.mxu0 0.0
    %233 = vmatprep.subr.mxu0 0.0
    %234 = vmatpush1.msra.mxu0 0.0
    %235 = vmatprep.subr.mxu0 0.0
    %236 = vmatpush1.msra.mxu0 0.0
    %237 = vmatprep.subr.mxu0 0.0
    %238 = vmatpush1.msra.mxu0 0.0
    %239 = vmatprep.subr.mxu0 0.0
    %240 = vmatpush1.msra.mxu0 0.0
    %241 = vmatprep.subr.mxu0 0.0
    %242 = vmatpush1.msra.mxu0 0.0
    %243 = vmatprep.subr.mxu0 0.0
    %244 = vmatpush1.msra.mxu0 0.0
    %245 = vmatprep.subr.mxu0 0.0
    %246 = vmatpush1.msra.mxu0 0.0
    %247 = vmatprep.subr.mxu0 0.0
    %248 = vmatpush1.msra.mxu0 0.0
    %249 = vmatprep.subr.mxu0 0.0
    %250 = vmatpush1.msra.mxu0 0.0
    %251 = vmatprep.subr.mxu0 0.0
    %252 = vmatpush1.msra.mxu0 0.0
    %253 = vmatprep.subr.mxu0 0.0
    %254 = vmatpush1.msra.mxu0 0.0
    %255 = vmatprep.subr.mxu0 0.0
    %256 = vmatpush1.msra.mxu0 0.0
    %257 = vmatprep.subr.mxu0 0.0
    %258 = vmatpush1.msra.mxu0 0.0
    %259 = vmatprep.subr.mxu0 0.0
    %260 = vmatpush1.msra.mxu0 0.0
    %261 = vmatprep.subr.mxu0 0.0
    %262 = vmatpush1.msra.mxu0 0.0
    %263 = vmatprep.subr.mxu0 0.0
    %264 = vmatpush1.msra.mxu0 0.0
    %265 = vmatprep.subr.mxu0 0.0
    %266 = vmatpush1.msra.mxu0 0.0
    %267 = vmatprep.subr.mxu0 0.0
    %268 = vmatpush1.msra.mxu0 0.0
    %269 = vmatprep.mubr.f32.mxu0 0.0
    %270 = vmatmul.mubr.f32.gmra.mrb[0].mxu0 %v203
    %v271 = vpop.f32.mrb[0].mxu0
    %v272 = vadd.f32 %v200, %v271
    %v273 = vpop.f32.mrb[0].mxu0
    %274 = vdwg.mxu0
    %v275 = vxor.u32 %v272, 2147483648
    %v276 = vmul.f32 %v275, 1.442695
    %v277 = vpow.pop %v276
    %v278 = vadd.f32 %v277, 1.0
    %v279 = vrcp.pop %v278
    %v280 = vmul.f32 1.0, %v279
    %v281 = vtanh.pop %v272
    %v282 = vmul.f32 %v280, 0.0
    %284 = vrot.lane.b32.xlu0 %v281, 64
    %v285 = vpop.permute.xlu0 %284
    %v287 = vmul.f32 %v280, %v285
    %289 = vrot.lane.b32.xlu0 %v287, 32
    %v290 = vpop.permute.xlu0 %289
    %v292 = vadd.f32 %v282, %v290
    %v293 = vtanh.pop %v292
    %295 = vrot.lane.b32.xlu0 %v293, 64
    %v296 = vpop.permute.xlu0 %295
    %v298 = vmul.f32 %v280, %v296
    %v299 = vsel %vm188, %v298, 0.0
    %v300 = vsel %vm188, %v292, 0.0
    %v303 = vunpack.c.l.s4 1966171168
    %v304 = vunpack.c.0.s8 %v303
    %v305 = vlaneseq
    %v306 = vshrl.u32 %v305, 7
    %v307 = vsub.s32 %v304, %v306
    %v308 = vrot.slane %v299, %v307
    %v309 = vcombine.high %v308, %v308
    %v311 = vunpack.c.l.s4 1966171168
    %v312 = vunpack.c.0.s8 %v311
    %v313 = vlaneseq
    %v314 = vshrl.u32 %v313, 7
    %v315 = vsub.s32 %v312, %v314
    %v316 = vrot.slane %v308, %v315
    %v318 = vunpack.c.l.s4 1966171168
    %v319 = vunpack.c.0.s8 %v318
    %v320 = vlaneseq
    %v321 = vshrl.u32 %v320, 7
    %v322 = vsub.s32 %v319, %v321
    %v323 = vrot.slane %v309, %v322
    %v324 = vlaneseq
    %v325 = vshrl.u32 %v324, 7
    %v326 = vsub.s32 0, %v325
    %v327 = vrot.slane %v316, %v326
    %v328 = vlaneseq
    %v329 = vshrl.u32 %v328, 7
    %v330 = vsub.s32 0, %v329
    %v331 = vrot.slane %v323, %v330
    %332 = vrot.lane.b32.xlu0 %v327, 32
    %v333 = vpop.permute.xlu0 %332
    %334 = vrot.lane.b32.xlu0 %v331, 32
    %v335 = vpop.permute.xlu0 %334
    %vm338 = vcmask 253952
    %339 = vst.msk [vmem:[#allocation5] sm:$0x1] %vm338, %v333
    %340 = vst.msk [vmem:[#allocation5 + $0x8] sm:$0x1] %vm338, %v335
    %vm341 = vcmp.gt.s32.totalorder %v62, 1
    %s342 = sld [smem:[#allocation2 + $0x1]]
    %s343 = scalar_lea.vmem %s2, %s342
    %v344 = vld [vmem:[%s343] sm:$0x1]
    %s345 = sld [smem:[#allocation2 + $0x81]]
    %s346 = scalar_lea.vmem %s2, %s345
    %v347 = vld [vmem:[%s346] sm:$0x1]
    %v349 = vlaneseq
    %v350 = vshrl.u32 %v349, 7
    %v351 = vsub.s32 0, %v350
    %v352 = vrot.slane %v347, %v351
    %v354 = vsel %vm76, %v344, %v352
    %355 = vrot.lane.b32.xlu0 %v189, 64
    %v356 = vpop.permute.xlu0 %355
    %v358 = vsel %vm78, %v354, %v356
    %v360 = vsel %vm86, %v358, 0
    %362 = vmatprep.subr.mxu0 0.0
    %363 = vmatpush1.msra.mxu0 %v44
    %364 = vmatprep.subr.mxu0 0.0
    %365 = vmatpush1.msra.mxu0 %v45
    %366 = vmatprep.subr.mxu0 0.0
    %367 = vmatpush1.msra.mxu0 %v46
    %368 = vmatprep.subr.mxu0 0.0
    %369 = vmatpush1.msra.mxu0 %v47
    %370 = vmatprep.subr.mxu0 0.0
    %371 = vmatpush1.msra.mxu0 %v48
    %372 = vmatprep.subr.mxu0 0.0
    %373 = vmatpush1.msra.mxu0 %v49
    %374 = vmatprep.subr.mxu0 0.0
    %375 = vmatpush1.msra.mxu0 %v50
    %376 = vmatprep.subr.mxu0 0.0
    %377 = vmatpush1.msra.mxu0 %v51
    %378 = vmatprep.subr.mxu0 0.0
    %379 = vmatpush1.msra.mxu0 0.0
    %380 = vmatprep.subr.mxu0 0.0
    %381 = vmatpush1.msra.mxu0 0.0
    %382 = vmatprep.subr.mxu0 0.0
    %383 = vmatpush1.msra.mxu0 0.0
    %384 = vmatprep.subr.mxu0 0.0
    %385 = vmatpush1.msra.mxu0 0.0
    %386 = vmatprep.subr.mxu0 0.0
    %387 = vmatpush1.msra.mxu0 0.0
    %388 = vmatprep.subr.mxu0 0.0
    %389 = vmatpush1.msra.mxu0 0.0
    %390 = vmatprep.subr.mxu0 0.0
    %391 = vmatpush1.msra.mxu0 0.0
    %392 = vmatprep.subr.mxu0 0.0
    %393 = vmatpush1.msra.mxu0 0.0
    %394 = vmatprep.subr.mxu0 0.0
    %395 = vmatpush1.msra.mxu0 0.0
    %396 = vmatprep.subr.mxu0 0.0
    %397 = vmatpush1.msra.mxu0 0.0
    %398 = vmatprep.subr.mxu0 0.0
    %399 = vmatpush1.msra.mxu0 0.0
    %400 = vmatprep.subr.mxu0 0.0
    %401 = vmatpush1.msra.mxu0 0.0
    %402 = vmatprep.subr.mxu0 0.0
    %403 = vmatpush1.msra.mxu0 0.0
    %404 = vmatprep.subr.mxu0 0.0
    %405 = vmatpush1.msra.mxu0 0.0
    %406 = vmatprep.subr.mxu0 0.0
    %407 = vmatpush1.msra.mxu0 0.0
    %408 = vmatprep.subr.mxu0 0.0
    %409 = vmatpush1.msra.mxu0 0.0
    %410 = vmatprep.subr.mxu0 0.0
    %411 = vmatpush1.msra.mxu0 0.0
    %412 = vmatprep.subr.mxu0 0.0
    %413 = vmatpush1.msra.mxu0 0.0
    %414 = vmatprep.subr.mxu0 0.0
    %415 = vmatpush1.msra.mxu0 0.0
    %416 = vmatprep.subr.mxu0 0.0
    %417 = vmatpush1.msra.mxu0 0.0
    %418 = vmatprep.subr.mxu0 0.0
    %419 = vmatpush1.msra.mxu0 0.0
    %420 = vmatprep.subr.mxu0 0.0
    %421 = vmatpush1.msra.mxu0 0.0
    %422 = vmatprep.subr.mxu0 0.0
    %423 = vmatpush1.msra.mxu0 0.0
    %424 = vmatprep.subr.mxu0 0.0
    %425 = vmatpush1.msra.mxu0 0.0
    %426 = vmatprep.mubr.f32.mxu0 0.0
    %427 = vmatmul.mubr.f32.gmra.mrb[0].mxu0 %v360
    %v428 = vpop.f32.mrb[0].mxu0
    %v429 = vadd.f32 %v84, %v428
    %v430 = vpop.f32.mrb[0].mxu0
    %431 = vdwg.mxu0
    %v432 = vxor.u32 %v429, 2147483648
    %v433 = vmul.f32 %v432, 1.442695
    %v434 = vpow.pop %v433
    %v435 = vadd.f32 %v434, 1.0
    %v436 = vrcp.pop %v435
    %v437 = vmul.f32 1.0, %v436
    %v438 = vtanh.pop %v429
    %v439 = vmul.f32 %v437, %v190
    %441 = vrot.lane.b32.xlu0 %v438, 64
    %v442 = vpop.permute.xlu0 %441
    %v444 = vmul.f32 %v437, %v442
    %446 = vrot.lane.b32.xlu0 %v444, 32
    %v447 = vpop.permute.xlu0 %446
    %v449 = vadd.f32 %v439, %v447
    %v450 = vtanh.pop %v449
    %452 = vrot.lane.b32.xlu0 %v450, 64
    %v453 = vpop.permute.xlu0 %452
    %v455 = vmul.f32 %v437, %v453
    %v456 = vsel %vm341, 1, 0
    %457 = vset.pattern.permute.xlu0 0
    %458 = vperm.xlu0 %457, %v456
    %v459 = vpop.permute.xlu0 %458
    %vm460 = vcmp.eq.s32.totalorder %v459, 1
    %v461 = vsel %vm460, %v455, %v189
    %v462 = vsel %vm460, %v449, %v190
    %464 = vrot.lane.b32.xlu0 %v461, 32
    %v465 = vpop.permute.xlu0 %464
    %467 = vrot.lane.b32.xlu0 %v299, 64
    %v468 = vpop.permute.xlu0 %467
    %v470 = vsel %vm78, %v465, %v468
    %v472 = vsel %vm86, %v470, 0
    %474 = vmatprep.subr.mxu0 0.0
    %475 = vmatpush1.msra.mxu0 %v53
    %476 = vmatprep.subr.mxu0 0.0
    %477 = vmatpush1.msra.mxu0 %v54
    %478 = vmatprep.subr.mxu0 0.0
    %479 = vmatpush1.msra.mxu0 %v55
    %480 = vmatprep.subr.mxu0 0.0
    %481 = vmatpush1.msra.mxu0 %v56
    %482 = vmatprep.subr.mxu0 0.0
    %483 = vmatpush1.msra.mxu0 %v57
    %484 = vmatprep.subr.mxu0 0.0
    %485 = vmatpush1.msra.mxu0 %v58
    %486 = vmatprep.subr.mxu0 0.0
    %487 = vmatpush1.msra.mxu0 %v59
    %488 = vmatprep.subr.mxu0 0.0
    %489 = vmatpush1.msra.mxu0 %v60
    %490 = vmatprep.subr.mxu0 0.0
    %491 = vmatpush1.msra.mxu0 0.0
    %492 = vmatprep.subr.mxu0 0.0
    %493 = vmatpush1.msra.mxu0 0.0
    %494 = vmatprep.subr.mxu0 0.0
    %495 = vmatpush1.msra.mxu0 0.0
    %496 = vmatprep.subr.mxu0 0.0
    %497 = vmatpush1.msra.mxu0 0.0
    %498 = vmatprep.subr.mxu0 0.0
    %499 = vmatpush1.msra.mxu0 0.0
    %500 = vmatprep.subr.mxu0 0.0
    %501 = vmatpush1.msra.mxu0 0.0
    %502 = vmatprep.subr.mxu0 0.0
    %503 = vmatpush1.msra.mxu0 0.0
    %504 = vmatprep.subr.mxu0 0.0
    %505 = vmatpush1.msra.mxu0 0.0
    %506 = vmatprep.subr.mxu0 0.0
    %507 = vmatpush1.msra.mxu0 0.0
    %508 = vmatprep.subr.mxu0 0.0
    %509 = vmatpush1.msra.mxu0 0.0
    %510 = vmatprep.subr.mxu0 0.0
    %511 = vmatpush1.msra.mxu0 0.0
    %512 = vmatprep.subr.mxu0 0.0
    %513 = vmatpush1.msra.mxu0 0.0
    %514 = vmatprep.subr.mxu0 0.0
    %515 = vmatpush1.msra.mxu0 0.0
    %516 = vmatprep.subr.mxu0 0.0
    %517 = vmatpush1.msra.mxu0 0.0
    %518 = vmatprep.subr.mxu0 0.0
    %519 = vmatpush1.msra.mxu0 0.0
    %520 = vmatprep.subr.mxu0 0.0
    %521 = vmatpush1.msra.mxu0 0.0
    %522 = vmatprep.subr.mxu0 0.0
    %523 = vmatpush1.msra.mxu0 0.0
    %524 = vmatprep.subr.mxu0 0.0
    %525 = vmatpush1.msra.mxu0 0.0
    %526 = vmatprep.subr.mxu0 0.0
    %527 = vmatpush1.msra.mxu0 0.0
    %528 = vmatprep.subr.mxu0 0.0
    %529 = vmatpush1.msra.mxu0 0.0
    %530 = vmatprep.subr.mxu0 0.0
    %531 = vmatpush1.msra.mxu0 0.0
    %532 = vmatprep.subr.mxu0 0.0
    %533 = vmatpush1.msra.mxu0 0.0
    %534 = vmatprep.subr.mxu0 0.0
    %535 = vmatpush1.msra.mxu0 0.0
    %536 = vmatprep.subr.mxu0 0.0
    %537 = vmatpush1.msra.mxu0 0.0
    %538 = vmatprep.mubr.f32.mxu0 0.0
    %539 = vmatmul.mubr.f32.gmra.mrb[0].mxu0 %v472
    %v540 = vpop.f32.mrb[0].mxu0
    %v541 = vadd.f32 %v200, %v540
    %v542 = vpop.f32.mrb[0].mxu0
    %543 = vdwg.mxu0
    %v544 = vxor.u32 %v541, 2147483648
    %v545 = vmul.f32 %v544, 1.442695
    %v546 = vpow.pop %v545
    %v547 = vadd.f32 %v546, 1.0
    %v548 = vrcp.pop %v547
    %v549 = vmul.f32 1.0, %v548
    %v550 = vtanh.pop %v541
    %v551 = vmul.f32 %v549, %v300
    %553 = vrot.lane.b32.xlu0 %v550, 64
    %v554 = vpop.permute.xlu0 %553
    %v556 = vmul.f32 %v549, %v554
    %558 = vrot.lane.b32.xlu0 %v556, 32
    %v559 = vpop.permute.xlu0 %558
    %v561 = vadd.f32 %v551, %v559
    %v562 = vtanh.pop %v561
    %564 = vrot.lane.b32.xlu0 %v562, 64
    %v565 = vpop.permute.xlu0 %564
    %v567 = vmul.f32 %v549, %v565
    %v568 = vsel %vm460, %v567, %v299
    %v569 = vsel %vm460, %v561, %v300
    %v570 = vsel %vm460, %v567, 0.0
    %v573 = vunpack.c.l.s4 1966171168
    %v574 = vunpack.c.0.s8 %v573
    %v575 = vlaneseq
    %v576 = vshrl.u32 %v575, 7
    %v577 = vsub.s32 %v574, %v576
    %v578 = vrot.slane %v570, %v577
    %v579 = vcombine.high %v578, %v578
    %v581 = vunpack.c.l.s4 1966171168
    %v582 = vunpack.c.0.s8 %v581
    %v583 = vlaneseq
    %v584 = vshrl.u32 %v583, 7
    %v585 = vsub.s32 %v582, %v584
    %v586 = vrot.slane %v578, %v585
    %v588 = vunpack.c.l.s4 1966171168
    %v589 = vunpack.c.0.s8 %v588
    %v590 = vlaneseq
    %v591 = vshrl.u32 %v590, 7
    %v592 = vsub.s32 %v589, %v591
    %v593 = vrot.slane %v579, %v592
    %v594 = vlaneseq
    %v595 = vshrl.u32 %v594, 7
    %v596 = vsub.s32 0, %v595
    %v597 = vrot.slane %v586, %v596
    %v598 = vlaneseq
    %v599 = vshrl.u32 %v598, 7
    %v600 = vsub.s32 0, %v599
    %v601 = vrot.slane %v593, %v600
    %602 = vrot.lane.b32.xlu0 %v597, 32
    %v603 = vpop.permute.xlu0 %602
    %604 = vrot.lane.b32.xlu0 %v601, 32
    %v605 = vpop.permute.xlu0 %604
    %608 = vst.msk [vmem:[#allocation5 + $0x1] sm:$0x1] %vm338, %v603
    %609 = vst.msk [vmem:[#allocation5 + $0x9] sm:$0x1] %vm338, %v605
    %vm610 = vcmp.gt.s32.totalorder %v62, 2
    %s611 = sld [smem:[#allocation2 + $0x2]]
    %s612 = scalar_lea.vmem %s2, %s611
    %v613 = vld [vmem:[%s612] sm:$0x1]
    %s614 = sld [smem:[#allocation2 + $0x82]]
    %s615 = scalar_lea.vmem %s2, %s614
    %v616 = vld [vmem:[%s615] sm:$0x1]
    %v618 = vlaneseq
    %v619 = vshrl.u32 %v618, 7
    %v620 = vsub.s32 0, %v619
    %v621 = vrot.slane %v616, %v620
    %v623 = vsel %vm76, %v613, %v621
    %624 = vrot.lane.b32.xlu0 %v461, 64
    %v625 = vpop.permute.xlu0 %624
    %v627 = vsel %vm78, %v623, %v625
    %v629 = vsel %vm86, %v627, 0
    %631 = vmatprep.subr.mxu0 0.0
    %632 = vmatpush1.msra.mxu0 %v44
    %633 = vmatprep.subr.mxu0 0.0
    %634 = vmatpush1.msra.mxu0 %v45
    %635 = vmatprep.subr.mxu0 0.0
    %636 = vmatpush1.msra.mxu0 %v46
    %637 = vmatprep.subr.mxu0 0.0
    %638 = vmatpush1.msra.mxu0 %v47
    %639 = vmatprep.subr.mxu0 0.0
    %640 = vmatpush1.msra.mxu0 %v48
    %641 = vmatprep.subr.mxu0 0.0
    %642 = vmatpush1.msra.mxu0 %v49
    %643 = vmatprep.subr.mxu0 0.0
    %644 = vmatpush1.msra.mxu0 %v50
    %645 = vmatprep.subr.mxu0 0.0
    %646 = vmatpush1.msra.mxu0 %v51
    %647 = vmatprep.subr.mxu0 0.0
    %648 = vmatpush1.msra.mxu0 0.0
    %649 = vmatprep.subr.mxu0 0.0
    %650 = vmatpush1.msra.mxu0 0.0
    %651 = vmatprep.subr.mxu0 0.0
    %652 = vmatpush1.msra.mxu0 0.0
    %653 = vmatprep.subr.mxu0 0.0
    %654 = vmatpush1.msra.mxu0 0.0
    %655 = vmatprep.subr.mxu0 0.0
    %656 = vmatpush1.msra.mxu0 0.0
    %657 = vmatprep.subr.mxu0 0.0
    %658 = vmatpush1.msra.mxu0 0.0
    %659 = vmatprep.subr.mxu0 0.0
    %660 = vmatpush1.msra.mxu0 0.0
    %661 = vmatprep.subr.mxu0 0.0
    %662 = vmatpush1.msra.mxu0 0.0
    %663 = vmatprep.subr.mxu0 0.0
    %664 = vmatpush1.msra.mxu0 0.0
    %665 = vmatprep.subr.mxu0 0.0
    %666 = vmatpush1.msra.mxu0 0.0
    %667 = vmatprep.subr.mxu0 0.0
    %668 = vmatpush1.msra.mxu0 0.0
    %669 = vmatprep.subr.mxu0 0.0
    %670 = vmatpush1.msra.mxu0 0.0
    %671 = vmatprep.subr.mxu0 0.0
    %672 = vmatpush1.msra.mxu0 0.0
    %673 = vmatprep.subr.mxu0 0.0
    %674 = vmatpush1.msra.mxu0 0.0
    %675 = vmatprep.subr.mxu0 0.0
    %676 = vmatpush1.msra.mxu0 0.0
    %677 = vmatprep.subr.mxu0 0.0
    %678 = vmatpush1.msra.mxu0 0.0
    %679 = vmatprep.subr.mxu0 0.0
    %680 = vmatpush1.msra.mxu0 0.0
    %681 = vmatprep.subr.mxu0 0.0
    %682 = vmatpush1.msra.mxu0 0.0
    %683 = vmatprep.subr.mxu0 0.0
    %684 = vmatpush1.msra.mxu0 0.0
    %685 = vmatprep.subr.mxu0 0.0
    %686 = vmatpush1.msra.mxu0 0.0
    %687 = vmatprep.subr.mxu0 0.0
    %688 = vmatpush1.msra.mxu0 0.0
    %689 = vmatprep.subr.mxu0 0.0
    %690 = vmatpush1.msra.mxu0 0.0
    %691 = vmatprep.subr.mxu0 0.0
    %692 = vmatpush1.msra.mxu0 0.0
    %693 = vmatprep.subr.mxu0 0.0
    %694 = vmatpush1.msra.mxu0 0.0
    %695 = vmatprep.mubr.f32.mxu0 0.0
    %696 = vmatmul.mubr.f32.gmra.mrb[0].mxu0 %v629
    %v697 = vpop.f32.mrb[0].mxu0
    %v698 = vadd.f32 %v84, %v697
    %v699 = vpop.f32.mrb[0].mxu0
    %700 = vdwg.mxu0
    %v701 = vxor.u32 %v698, 2147483648
    %v702 = vmul.f32 %v701, 1.442695
    %v703 = vpow.pop %v702
    %v704 = vadd.f32 %v703, 1.0
    %v705 = vrcp.pop %v704
    %v706 = vmul.f32 1.0, %v705
    %v707 = vtanh.pop %v698
    %v708 = vmul.f32 %v706, %v462
    %710 = vrot.lane.b32.xlu0 %v707, 64
    %v711 = vpop.permute.xlu0 %710
    %v713 = vmul.f32 %v706, %v711
    %715 = vrot.lane.b32.xlu0 %v713, 32
    %v716 = vpop.permute.xlu0 %715
    %v718 = vadd.f32 %v708, %v716
    %v719 = vtanh.pop %v718
    %721 = vrot.lane.b32.xlu0 %v719, 64
    %v722 = vpop.permute.xlu0 %721
    %v724 = vmul.f32 %v706, %v722
    %v725 = vsel %vm610, 1, 0
    %726 = vset.pattern.permute.xlu0 0
    %727 = vperm.xlu0 %726, %v725
    %v728 = vpop.permute.xlu0 %727
    %vm729 = vcmp.eq.s32.totalorder %v728, 1
    %v730 = vsel %vm729, %v724, %v461
    %v731 = vsel %vm729, %v718, %v462
    %733 = vrot.lane.b32.xlu0 %v730, 32
    %v734 = vpop.permute.xlu0 %733
    %737 = vrot.lane.b32.xlu0 %v568, 64
    %v738 = vpop.permute.xlu0 %737
    %v740 = vsel %vm78, %v734, %v738
    %v742 = vsel %vm86, %v740, 0
    %744 = vmatprep.subr.mxu0 0.0
    %745 = vmatpush1.msra.mxu0 %v53
    %746 = vmatprep.subr.mxu0 0.0
    %747 = vmatpush1.msra.mxu0 %v54
    %748 = vmatprep.subr.mxu0 0.0
    %749 = vmatpush1.msra.mxu0 %v55
    %750 = vmatprep.subr.mxu0 0.0
    %751 = vmatpush1.msra.mxu0 %v56
    %752 = vmatprep.subr.mxu0 0.0
    %753 = vmatpush1.msra.mxu0 %v57
    %754 = vmatprep.subr.mxu0 0.0
    %755 = vmatpush1.msra.mxu0 %v58
    %756 = vmatprep.subr.mxu0 0.0
    %757 = vmatpush1.msra.mxu0 %v59
    %758 = vmatprep.subr.mxu0 0.0
    %759 = vmatpush1.msra.mxu0 %v60
    %760 = vmatprep.subr.mxu0 0.0
    %761 = vmatpush1.msra.mxu0 0.0
    %762 = vmatprep.subr.mxu0 0.0
    %763 = vmatpush1.msra.mxu0 0.0
    %764 = vmatprep.subr.mxu0 0.0
    %765 = vmatpush1.msra.mxu0 0.0
    %766 = vmatprep.subr.mxu0 0.0
    %767 = vmatpush1.msra.mxu0 0.0
    %768 = vmatprep.subr.mxu0 0.0
    %769 = vmatpush1.msra.mxu0 0.0
    %770 = vmatprep.subr.mxu0 0.0
    %771 = vmatpush1.msra.mxu0 0.0
    %772 = vmatprep.subr.mxu0 0.0
    %773 = vmatpush1.msra.mxu0 0.0
    %774 = vmatprep.subr.mxu0 0.0
    %775 = vmatpush1.msra.mxu0 0.0
    %776 = vmatprep.subr.mxu0 0.0
    %777 = vmatpush1.msra.mxu0 0.0
    %778 = vmatprep.subr.mxu0 0.0
    %779 = vmatpush1.msra.mxu0 0.0
    %780 = vmatprep.subr.mxu0 0.0
    %781 = vmatpush1.msra.mxu0 0.0
    %782 = vmatprep.subr.mxu0 0.0
    %783 = vmatpush1.msra.mxu0 0.0
    %784 = vmatprep.subr.mxu0 0.0
    %785 = vmatpush1.msra.mxu0 0.0
    %786 = vmatprep.subr.mxu0 0.0
    %787 = vmatpush1.msra.mxu0 0.0
    %788 = vmatprep.subr.mxu0 0.0
    %789 = vmatpush1.msra.mxu0 0.0
    %790 = vmatprep.subr.mxu0 0.0
    %791 = vmatpush1.msra.mxu0 0.0
    %792 = vmatprep.subr.mxu0 0.0
    %793 = vmatpush1.msra.mxu0 0.0
    %794 = vmatprep.subr.mxu0 0.0
    %795 = vmatpush1.msra.mxu0 0.0
    %796 = vmatprep.subr.mxu0 0.0
    %797 = vmatpush1.msra.mxu0 0.0
    %798 = vmatprep.subr.mxu0 0.0
    %799 = vmatpush1.msra.mxu0 0.0
    %800 = vmatprep.subr.mxu0 0.0
    %801 = vmatpush1.msra.mxu0 0.0
    %802 = vmatprep.subr.mxu0 0.0
    %803 = vmatpush1.msra.mxu0 0.0
    %804 = vmatprep.subr.mxu0 0.0
    %805 = vmatpush1.msra.mxu0 0.0
    %806 = vmatprep.subr.mxu0 0.0
    %807 = vmatpush1.msra.mxu0 0.0
    %808 = vmatprep.mubr.f32.mxu0 0.0
    %809 = vmatmul.mubr.f32.gmra.mrb[0].mxu0 %v742
    %v810 = vpop.f32.mrb[0].mxu0
    %v811 = vadd.f32 %v200, %v810
    %v812 = vpop.f32.mrb[0].mxu0
    %813 = vdwg.mxu0
    %v814 = vxor.u32 %v811, 2147483648
    %v815 = vmul.f32 %v814, 1.442695
    %v816 = vpow.pop %v815
    %v817 = vadd.f32 %v816, 1.0
    %v818 = vrcp.pop %v817
    %v819 = vmul.f32 1.0, %v818
    %v820 = vtanh.pop %v811
    %v821 = vmul.f32 %v819, %v569
    %823 = vrot.lane.b32.xlu0 %v820, 64
    %v824 = vpop.permute.xlu0 %823
    %v826 = vmul.f32 %v819, %v824
    %828 = vrot.lane.b32.xlu0 %v826, 32
    %v829 = vpop.permute.xlu0 %828
    %v831 = vadd.f32 %v821, %v829
    %v832 = vtanh.pop %v831
    %834 = vrot.lane.b32.xlu0 %v832, 64
    %v835 = vpop.permute.xlu0 %834
    %v837 = vmul.f32 %v819, %v835
    %v838 = vsel %vm729, %v837, %v568
    %v839 = vsel %vm729, %v831, %v569
    %v840 = vsel %vm729, %v837, 0.0
    %v843 = vunpack.c.l.s4 1966171168
    %v844 = vunpack.c.0.s8 %v843
    %v845 = vlaneseq
    %v846 = vshrl.u32 %v845, 7
    %v847 = vsub.s32 %v844, %v846
    %v848 = vrot.slane %v840, %v847
    %v849 = vcombine.high %v848, %v848
    %v851 = vunpack.c.l.s4 1966171168
    %v852 = vunpack.c.0.s8 %v851
    %v853 = vlaneseq
    %v854 = vshrl.u32 %v853, 7
    %v855 = vsub.s32 %v852, %v854
    %v856 = vrot.slane %v848, %v855
    %v858 = vunpack.c.l.s4 1966171168
    %v859 = vunpack.c.0.s8 %v858
    %v860 = vlaneseq
    %v861 = vshrl.u32 %v860, 7
    %v862 = vsub.s32 %v859, %v861
    %v863 = vrot.slane %v849, %v862
    %v864 = vlaneseq
    %v865 = vshrl.u32 %v864, 7
    %v866 = vsub.s32 0, %v865
    %v867 = vrot.slane %v856, %v866
    %v868 = vlaneseq
    %v869 = vshrl.u32 %v868, 7
    %v870 = vsub.s32 0, %v869
    %v871 = vrot.slane %v863, %v870
    %872 = vrot.lane.b32.xlu0 %v867, 32
    %v873 = vpop.permute.xlu0 %872
    %874 = vrot.lane.b32.xlu0 %v871, 32
    %v875 = vpop.permute.xlu0 %874
    %878 = vst.msk [vmem:[#allocation5 + $0x2] sm:$0x1] %vm338, %v873
    %879 = vst.msk [vmem:[#allocation5 + $0xa] sm:$0x1] %vm338, %v875
    %vm880 = vcmp.gt.s32.totalorder %v62, 3
    %s881 = sld [smem:[#allocation2 + $0x3]]
    %s882 = scalar_lea.vmem %s2, %s881
    %v883 = vld [vmem:[%s882] sm:$0x1]
    %s884 = sld [smem:[#allocation2 + $0x83]]
    %s885 = scalar_lea.vmem %s2, %s884
    %v886 = vld [vmem:[%s885] sm:$0x1]
    %v888 = vlaneseq
    %v889 = vshrl.u32 %v888, 7
    %v890 = vsub.s32 0, %v889
    %v891 = vrot.slane %v886, %v890
    %v893 = vsel %vm76, %v883, %v891
    %894 = vrot.lane.b32.xlu0 %v730, 64
    %v895 = vpop.permute.xlu0 %894
    %v897 = vsel %vm78, %v893, %v895
    %v899 = vsel %vm86, %v897, 0
    %901 = vmatprep.subr.mxu0 0.0
    %902 = vmatpush1.msra.mxu0 %v44
    %903 = vmatprep.subr.mxu0 0.0
    %904 = vmatpush1.msra.mxu0 %v45
    %905 = vmatprep.subr.mxu0 0.0
    %906 = vmatpush1.msra.mxu0 %v46
    %907 = vmatprep.subr.mxu0 0.0
    %908 = vmatpush1.msra.mxu0 %v47
    %909 = vmatprep.subr.mxu0 0.0
    %910 = vmatpush1.msra.mxu0 %v48
    %911 = vmatprep.subr.mxu0 0.0
    %912 = vmatpush1.msra.mxu0 %v49
    %913 = vmatprep.subr.mxu0 0.0
    %914 = vmatpush1.msra.mxu0 %v50
    %915 = vmatprep.subr.mxu0 0.0
    %916 = vmatpush1.msra.mxu0 %v51
    %917 = vmatprep.subr.mxu0 0.0
    %918 = vmatpush1.msra.mxu0 0.0
    %919 = vmatprep.subr.mxu0 0.0
    %920 = vmatpush1.msra.mxu0 0.0
    %921 = vmatprep.subr.mxu0 0.0
    %922 = vmatpush1.msra.mxu0 0.0
    %923 = vmatprep.subr.mxu0 0.0
    %924 = vmatpush1.msra.mxu0 0.0
    %925 = vmatprep.subr.mxu0 0.0
    %926 = vmatpush1.msra.mxu0 0.0
    %927 = vmatprep.subr.mxu0 0.0
    %928 = vmatpush1.msra.mxu0 0.0
    %929 = vmatprep.subr.mxu0 0.0
    %930 = vmatpush1.msra.mxu0 0.0
    %931 = vmatprep.subr.mxu0 0.0
    %932 = vmatpush1.msra.mxu0 0.0
    %933 = vmatprep.subr.mxu0 0.0
    %934 = vmatpush1.msra.mxu0 0.0
    %935 = vmatprep.subr.mxu0 0.0
    %936 = vmatpush1.msra.mxu0 0.0
    %937 = vmatprep.subr.mxu0 0.0
    %938 = vmatpush1.msra.mxu0 0.0
    %939 = vmatprep.subr.mxu0 0.0
    %940 = vmatpush1.msra.mxu0 0.0
    %941 = vmatprep.subr.mxu0 0.0
    %942 = vmatpush1.msra.mxu0 0.0
    %943 = vmatprep.subr.mxu0 0.0
    %944 = vmatpush1.msra.mxu0 0.0
    %945 = vmatprep.subr.mxu0 0.0
    %946 = vmatpush1.msra.mxu0 0.0
    %947 = vmatprep.subr.mxu0 0.0
    %948 = vmatpush1.msra.mxu0 0.0
    %949 = vmatprep.subr.mxu0 0.0
    %950 = vmatpush1.msra.mxu0 0.0
    %951 = vmatprep.subr.mxu0 0.0
    %952 = vmatpush1.msra.mxu0 0.0
    %953 = vmatprep.subr.mxu0 0.0
    %954 = vmatpush1.msra.mxu0 0.0
    %955 = vmatprep.subr.mxu0 0.0
    %956 = vmatpush1.msra.mxu0 0.0
    %957 = vmatprep.subr.mxu0 0.0
    %958 = vmatpush1.msra.mxu0 0.0
    %959 = vmatprep.subr.mxu0 0.0
    %960 = vmatpush1.msra.mxu0 0.0
    %961 = vmatprep.subr.mxu0 0.0
    %962 = vmatpush1.msra.mxu0 0.0
    %963 = vmatprep.subr.mxu0 0.0
    %964 = vmatpush1.msra.mxu0 0.0
    %965 = vmatprep.mubr.f32.mxu0 0.0
    %966 = vmatmul.mubr.f32.gmra.mrb[0].mxu0 %v899
    %v967 = vpop.f32.mrb[0].mxu0
    %v968 = vadd.f32 %v84, %v967
    %v969 = vpop.f32.mrb[0].mxu0
    %970 = vdwg.mxu0
    %v971 = vxor.u32 %v968, 2147483648
    %v972 = vmul.f32 %v971, 1.442695
    %v973 = vpow.pop %v972
    %v974 = vadd.f32 %v973, 1.0
    %v975 = vrcp.pop %v974
    %v976 = vmul.f32 1.0, %v975
    %v977 = vtanh.pop %v968
    %v978 = vmul.f32 %v976, %v731
    %980 = vrot.lane.b32.xlu0 %v977, 64
    %v981 = vpop.permute.xlu0 %980
    %v983 = vmul.f32 %v976, %v981
    %985 = vrot.lane.b32.xlu0 %v983, 32
    %v986 = vpop.permute.xlu0 %985
    %v988 = vadd.f32 %v978, %v986
    %v989 = vtanh.pop %v988
    %991 = vrot.lane.b32.xlu0 %v989, 64
    %v992 = vpop.permute.xlu0 %991
    %v994 = vmul.f32 %v976, %v992
    %v995 = vsel %vm880, 1, 0
    %996 = vset.pattern.permute.xlu0 0
    %997 = vperm.xlu0 %996, %v995
    %v998 = vpop.permute.xlu0 %997
    %vm999 = vcmp.eq.s32.totalorder %v998, 1
    %v1000 = vsel %vm999, %v994, %v730
    %v1001 = vsel %vm999, %v988, %v731
    %1003 = vrot.lane.b32.xlu0 %v1000, 32
    %v1004 = vpop.permute.xlu0 %1003
    %1007 = vrot.lane.b32.xlu0 %v838, 64
    %v1008 = vpop.permute.xlu0 %1007
    %v1010 = vsel %vm78, %v1004, %v1008
    %v1012 = vsel %vm86, %v1010, 0
    %1014 = vmatprep.subr.mxu0 0.0
    %1015 = vmatpush1.msra.mxu0 %v53
    %1016 = vmatprep.subr.mxu0 0.0
    %1017 = vmatpush1.msra.mxu0 %v54
    %1018 = vmatprep.subr.mxu0 0.0
    %1019 = vmatpush1.msra.mxu0 %v55
    %1020 = vmatprep.subr.mxu0 0.0
    %1021 = vmatpush1.msra.mxu0 %v56
    %1022 = vmatprep.subr.mxu0 0.0
    %1023 = vmatpush1.msra.mxu0 %v57
    %1024 = vmatprep.subr.mxu0 0.0
    %1025 = vmatpush1.msra.mxu0 %v58
    %1026 = vmatprep.subr.mxu0 0.0
    %1027 = vmatpush1.msra.mxu0 %v59
    %1028 = vmatprep.subr.mxu0 0.0
    %1029 = vmatpush1.msra.mxu0 %v60
    %1030 = vmatprep.subr.mxu0 0.0
    %1031 = vmatpush1.msra.mxu0 0.0
    %1032 = vmatprep.subr.mxu0 0.0
    %1033 = vmatpush1.msra.mxu0 0.0
    %1034 = vmatprep.subr.mxu0 0.0
    %1035 = vmatpush1.msra.mxu0 0.0
    %1036 = vmatprep.subr.mxu0 0.0
    %1037 = vmatpush1.msra.mxu0 0.0
    %1038 = vmatprep.subr.mxu0 0.0
    %1039 = vmatpush1.msra.mxu0 0.0
    %1040 = vmatprep.subr.mxu0 0.0
    %1041 = vmatpush1.msra.mxu0 0.0
    %1042 = vmatprep.subr.mxu0 0.0
    %1043 = vmatpush1.msra.mxu0 0.0
    %1044 = vmatprep.subr.mxu0 0.0
    %1045 = vmatpush1.msra.mxu0 0.0
    %1046 = vmatprep.subr.mxu0 0.0
    %1047 = vmatpush1.msra.mxu0 0.0
    %1048 = vmatprep.subr.mxu0 0.0
    %1049 = vmatpush1.msra.mxu0 0.0
    %1050 = vmatprep.subr.mxu0 0.0
    %1051 = vmatpush1.msra.mxu0 0.0
    %1052 = vmatprep.subr.mxu0 0.0
    %1053 = vmatpush1.msra.mxu0 0.0
    %1054 = vmatprep.subr.mxu0 0.0
    %1055 = vmatpush1.msra.mxu0 0.0
    %1056 = vmatprep.subr.mxu0 0.0
    %1057 = vmatpush1.msra.mxu0 0.0
    %1058 = vmatprep.subr.mxu0 0.0
    %1059 = vmatpush1.msra.mxu0 0.0
    %1060 = vmatprep.subr.mxu0 0.0
    %1061 = vmatpush1.msra.mxu0 0.0
    %1062 = vmatprep.subr.mxu0 0.0
    %1063 = vmatpush1.msra.mxu0 0.0
    %1064 = vmatprep.subr.mxu0 0.0
    %1065 = vmatpush1.msra.mxu0 0.0
    %1066 = vmatprep.subr.mxu0 0.0
    %1067 = vmatpush1.msra.mxu0 0.0
    %1068 = vmatprep.subr.mxu0 0.0
    %1069 = vmatpush1.msra.mxu0 0.0
    %1070 = vmatprep.subr.mxu0 0.0
    %1071 = vmatpush1.msra.mxu0 0.0
    %1072 = vmatprep.subr.mxu0 0.0
    %1073 = vmatpush1.msra.mxu0 0.0
    %1074 = vmatprep.subr.mxu0 0.0
    %1075 = vmatpush1.msra.mxu0 0.0
    %1076 = vmatprep.subr.mxu0 0.0
    %1077 = vmatpush1.msra.mxu0 0.0
    %1078 = vmatprep.mubr.f32.mxu0 0.0
    %1079 = vmatmul.mubr.f32.gmra.mrb[0].mxu0 %v1012
    %v1080 = vpop.f32.mrb[0].mxu0
    %v1081 = vadd.f32 %v200, %v1080
    %v1082 = vpop.f32.mrb[0].mxu0
    %1083 = vdwg.mxu0
    %v1084 = vxor.u32 %v1081, 2147483648
    %v1085 = vmul.f32 %v1084, 1.442695
    %v1086 = vpow.pop %v1085
    %v1087 = vadd.f32 %v1086, 1.0
    %v1088 = vrcp.pop %v1087
    %v1089 = vmul.f32 1.0, %v1088
    %v1090 = vtanh.pop %v1081
    %v1091 = vmul.f32 %v1089, %v839
    %1093 = vrot.lane.b32.xlu0 %v1090, 64
    %v1094 = vpop.permute.xlu0 %1093
    %v1096 = vmul.f32 %v1089, %v1094
    %1098 = vrot.lane.b32.xlu0 %v1096, 32
    %v1099 = vpop.permute.xlu0 %1098
    %v1101 = vadd.f32 %v1091, %v1099
    %v1102 = vtanh.pop %v1101
    %1104 = vrot.lane.b32.xlu0 %v1102, 64
    %v1105 = vpop.permute.xlu0 %1104
    %v1107 = vmul.f32 %v1089, %v1105
    %v1108 = vsel %vm999, %v1107, %v838
    %v1109 = vsel %vm999, %v1101, %v839
    %v1110 = vsel %vm999, %v1107, 0.0
    %v1113 = vunpack.c.l.s4 1966171168
    %v1114 = vunpack.c.0.s8 %v1113
    %v1115 = vlaneseq
    %v1116 = vshrl.u32 %v1115, 7
    %v1117 = vsub.s32 %v1114, %v1116
    %v1118 = vrot.slane %v1110, %v1117
    %v1119 = vcombine.high %v1118, %v1118
    %v1121 = vunpack.c.l.s4 1966171168
    %v1122 = vunpack.c.0.s8 %v1121
    %v1123 = vlaneseq
    %v1124 = vshrl.u32 %v1123, 7
    %v1125 = vsub.s32 %v1122, %v1124
    %v1126 = vrot.slane %v1118, %v1125
    %v1128 = vunpack.c.l.s4 1966171168
    %v1129 = vunpack.c.0.s8 %v1128
    %v1130 = vlaneseq
    %v1131 = vshrl.u32 %v1130, 7
    %v1132 = vsub.s32 %v1129, %v1131
    %v1133 = vrot.slane %v1119, %v1132
    %v1134 = vlaneseq
    %v1135 = vshrl.u32 %v1134, 7
    %v1136 = vsub.s32 0, %v1135
    %v1137 = vrot.slane %v1126, %v1136
    %v1138 = vlaneseq
    %v1139 = vshrl.u32 %v1138, 7
    %v1140 = vsub.s32 0, %v1139
    %v1141 = vrot.slane %v1133, %v1140
    %1142 = vrot.lane.b32.xlu0 %v1137, 32
    %v1143 = vpop.permute.xlu0 %1142
    %1144 = vrot.lane.b32.xlu0 %v1141, 32
    %v1145 = vpop.permute.xlu0 %1144
    %1148 = vst.msk [vmem:[#allocation5 + $0x3] sm:$0x1] %vm338, %v1143
    %1149 = vst.msk [vmem:[#allocation5 + $0xb] sm:$0x1] %vm338, %v1145
    %vm1150 = vcmp.gt.s32.totalorder %v62, 4
    %s1151 = sld [smem:[#allocation2 + $0x4]]
    %s1152 = scalar_lea.vmem %s2, %s1151
    %v1153 = vld [vmem:[%s1152] sm:$0x1]
    %s1154 = sld [smem:[#allocation2 + $0x84]]
    %s1155 = scalar_lea.vmem %s2, %s1154
    %v1156 = vld [vmem:[%s1155] sm:$0x1]
    %v1158 = vlaneseq
    %v1159 = vshrl.u32 %v1158, 7
    %v1160 = vsub.s32 0, %v1159
    %v1161 = vrot.slane %v1156, %v1160
    %v1163 = vsel %vm76, %v1153, %v1161
    %1164 = vrot.lane.b32.xlu0 %v1000, 64
    %v1165 = vpop.permute.xlu0 %1164
    %v1167 = vsel %vm78, %v1163, %v1165
    %v1169 = vsel %vm86, %v1167, 0
    %1171 = vmatprep.subr.mxu0 0.0
    %1172 = vmatpush1.msra.mxu0 %v44
    %1173 = vmatprep.subr.mxu0 0.0
    %1174 = vmatpush1.msra.mxu0 %v45
    %1175 = vmatprep.subr.mxu0 0.0
    %1176 = vmatpush1.msra.mxu0 %v46
    %1177 = vmatprep.subr.mxu0 0.0
    %1178 = vmatpush1.msra.mxu0 %v47
    %1179 = vmatprep.subr.mxu0 0.0
    %1180 = vmatpush1.msra.mxu0 %v48
    %1181 = vmatprep.subr.mxu0 0.0
    %1182 = vmatpush1.msra.mxu0 %v49
    %1183 = vmatprep.subr.mxu0 0.0
    %1184 = vmatpush1.msra.mxu0 %v50
    %1185 = vmatprep.subr.mxu0 0.0
    %1186 = vmatpush1.msra.mxu0 %v51
    %1187 = vmatprep.subr.mxu0 0.0
    %1188 = vmatpush1.msra.mxu0 0.0
    %1189 = vmatprep.subr.mxu0 0.0
    %1190 = vmatpush1.msra.mxu0 0.0
    %1191 = vmatprep.subr.mxu0 0.0
    %1192 = vmatpush1.msra.mxu0 0.0
    %1193 = vmatprep.subr.mxu0 0.0
    %1194 = vmatpush1.msra.mxu0 0.0
    %1195 = vmatprep.subr.mxu0 0.0
    %1196 = vmatpush1.msra.mxu0 0.0
    %1197 = vmatprep.subr.mxu0 0.0
    %1198 = vmatpush1.msra.mxu0 0.0
    %1199 = vmatprep.subr.mxu0 0.0
    %1200 = vmatpush1.msra.mxu0 0.0
    %1201 = vmatprep.subr.mxu0 0.0
    %1202 = vmatpush1.msra.mxu0 0.0
    %1203 = vmatprep.subr.mxu0 0.0
    %1204 = vmatpush1.msra.mxu0 0.0
    %1205 = vmatprep.subr.mxu0 0.0
    %1206 = vmatpush1.msra.mxu0 0.0
    %1207 = vmatprep.subr.mxu0 0.0
    %1208 = vmatpush1.msra.mxu0 0.0
    %1209 = vmatprep.subr.mxu0 0.0
    %1210 = vmatpush1.msra.mxu0 0.0
    %1211 = vmatprep.subr.mxu0 0.0
    %1212 = vmatpush1.msra.mxu0 0.0
    %1213 = vmatprep.subr.mxu0 0.0
    %1214 = vmatpush1.msra.mxu0 0.0
    %1215 = vmatprep.subr.mxu0 0.0
    %1216 = vmatpush1.msra.mxu0 0.0
    %1217 = vmatprep.subr.mxu0 0.0
    %1218 = vmatpush1.msra.mxu0 0.0
    %1219 = vmatprep.subr.mxu0 0.0
    %1220 = vmatpush1.msra.mxu0 0.0
    %1221 = vmatprep.subr.mxu0 0.0
    %1222 = vmatpush1.msra.mxu0 0.0
    %1223 = vmatprep.subr.mxu0 0.0
    %1224 = vmatpush1.msra.mxu0 0.0
    %1225 = vmatprep.subr.mxu0 0.0
    %1226 = vmatpush1.msra.mxu0 0.0
    %1227 = vmatprep.subr.mxu0 0.0
    %1228 = vmatpush1.msra.mxu0 0.0
    %1229 = vmatprep.subr.mxu0 0.0
    %1230 = vmatpush1.msra.mxu0 0.0
    %1231 = vmatprep.subr.mxu0 0.0
    %1232 = vmatpush1.msra.mxu0 0.0
    %1233 = vmatprep.subr.mxu0 0.0
    %1234 = vmatpush1.msra.mxu0 0.0
    %1235 = vmatprep.mubr.f32.mxu0 0.0
    %1236 = vmatmul.mubr.f32.gmra.mrb[0].mxu0 %v1169
    %v1237 = vpop.f32.mrb[0].mxu0
    %v1238 = vadd.f32 %v84, %v1237
    %v1239 = vpop.f32.mrb[0].mxu0
    %1240 = vdwg.mxu0
    %v1241 = vxor.u32 %v1238, 2147483648
    %v1242 = vmul.f32 %v1241, 1.442695
    %v1243 = vpow.pop %v1242
    %v1244 = vadd.f32 %v1243, 1.0
    %v1245 = vrcp.pop %v1244
    %v1246 = vmul.f32 1.0, %v1245
    %v1247 = vtanh.pop %v1238
    %v1248 = vmul.f32 %v1246, %v1001
    %1250 = vrot.lane.b32.xlu0 %v1247, 64
    %v1251 = vpop.permute.xlu0 %1250
    %v1253 = vmul.f32 %v1246, %v1251
    %1255 = vrot.lane.b32.xlu0 %v1253, 32
    %v1256 = vpop.permute.xlu0 %1255
    %v1258 = vadd.f32 %v1248, %v1256
    %v1259 = vtanh.pop %v1258
    %1261 = vrot.lane.b32.xlu0 %v1259, 64
    %v1262 = vpop.permute.xlu0 %1261
    %v1264 = vmul.f32 %v1246, %v1262
    %v1265 = vsel %vm1150, 1, 0
    %1266 = vset.pattern.permute.xlu0 0
    %1267 = vperm.xlu0 %1266, %v1265
    %v1268 = vpop.permute.xlu0 %1267
    %vm1269 = vcmp.eq.s32.totalorder %v1268, 1
    %v1270 = vsel %vm1269, %v1264, %v1000
    %v1271 = vsel %vm1269, %v1258, %v1001
    %1273 = vrot.lane.b32.xlu0 %v1270, 32
    %v1274 = vpop.permute.xlu0 %1273
    %1277 = vrot.lane.b32.xlu0 %v1108, 64
    %v1278 = vpop.permute.xlu0 %1277
    %v1280 = vsel %vm78, %v1274, %v1278
    %v1282 = vsel %vm86, %v1280, 0
    %1284 = vmatprep.subr.mxu0 0.0
    %1285 = vmatpush1.msra.mxu0 %v53
    %1286 = vmatprep.subr.mxu0 0.0
    %1287 = vmatpush1.msra.mxu0 %v54
    %1288 = vmatprep.subr.mxu0 0.0
    %1289 = vmatpush1.msra.mxu0 %v55
    %1290 = vmatprep.subr.mxu0 0.0
    %1291 = vmatpush1.msra.mxu0 %v56
    %1292 = vmatprep.subr.mxu0 0.0
    %1293 = vmatpush1.msra.mxu0 %v57
    %1294 = vmatprep.subr.mxu0 0.0
    %1295 = vmatpush1.msra.mxu0 %v58
    %1296 = vmatprep.subr.mxu0 0.0
    %1297 = vmatpush1.msra.mxu0 %v59
    %1298 = vmatprep.subr.mxu0 0.0
    %1299 = vmatpush1.msra.mxu0 %v60
    %1300 = vmatprep.subr.mxu0 0.0
    %1301 = vmatpush1.msra.mxu0 0.0
    %1302 = vmatprep.subr.mxu0 0.0
    %1303 = vmatpush1.msra.mxu0 0.0
    %1304 = vmatprep.subr.mxu0 0.0
    %1305 = vmatpush1.msra.mxu0 0.0
    %1306 = vmatprep.subr.mxu0 0.0
    %1307 = vmatpush1.msra.mxu0 0.0
    %1308 = vmatprep.subr.mxu0 0.0
    %1309 = vmatpush1.msra.mxu0 0.0
    %1310 = vmatprep.subr.mxu0 0.0
    %1311 = vmatpush1.msra.mxu0 0.0
    %1312 = vmatprep.subr.mxu0 0.0
    %1313 = vmatpush1.msra.mxu0 0.0
    %1314 = vmatprep.subr.mxu0 0.0
    %1315 = vmatpush1.msra.mxu0 0.0
    %1316 = vmatprep.subr.mxu0 0.0
    %1317 = vmatpush1.msra.mxu0 0.0
    %1318 = vmatprep.subr.mxu0 0.0
    %1319 = vmatpush1.msra.mxu0 0.0
    %1320 = vmatprep.subr.mxu0 0.0
    %1321 = vmatpush1.msra.mxu0 0.0
    %1322 = vmatprep.subr.mxu0 0.0
    %1323 = vmatpush1.msra.mxu0 0.0
    %1324 = vmatprep.subr.mxu0 0.0
    %1325 = vmatpush1.msra.mxu0 0.0
    %1326 = vmatprep.subr.mxu0 0.0
    %1327 = vmatpush1.msra.mxu0 0.0
    %1328 = vmatprep.subr.mxu0 0.0
    %1329 = vmatpush1.msra.mxu0 0.0
    %1330 = vmatprep.subr.mxu0 0.0
    %1331 = vmatpush1.msra.mxu0 0.0
    %1332 = vmatprep.subr.mxu0 0.0
    %1333 = vmatpush1.msra.mxu0 0.0
    %1334 = vmatprep.subr.mxu0 0.0
    %1335 = vmatpush1.msra.mxu0 0.0
    %1336 = vmatprep.subr.mxu0 0.0
    %1337 = vmatpush1.msra.mxu0 0.0
    %1338 = vmatprep.subr.mxu0 0.0
    %1339 = vmatpush1.msra.mxu0 0.0
    %1340 = vmatprep.subr.mxu0 0.0
    %1341 = vmatpush1.msra.mxu0 0.0
    %1342 = vmatprep.subr.mxu0 0.0
    %1343 = vmatpush1.msra.mxu0 0.0
    %1344 = vmatprep.subr.mxu0 0.0
    %1345 = vmatpush1.msra.mxu0 0.0
    %1346 = vmatprep.subr.mxu0 0.0
    %1347 = vmatpush1.msra.mxu0 0.0
    %1348 = vmatprep.mubr.f32.mxu0 0.0
    %1349 = vmatmul.mubr.f32.gmra.mrb[0].mxu0 %v1282
    %v1350 = vpop.f32.mrb[0].mxu0
    %v1351 = vadd.f32 %v200, %v1350
    %v1352 = vpop.f32.mrb[0].mxu0
    %1353 = vdwg.mxu0
    %v1354 = vxor.u32 %v1351, 2147483648
    %v1355 = vmul.f32 %v1354, 1.442695
    %v1356 = vpow.pop %v1355
    %v1357 = vadd.f32 %v1356, 1.0
    %v1358 = vrcp.pop %v1357
    %v1359 = vmul.f32 1.0, %v1358
    %v1360 = vtanh.pop %v1351
    %v1361 = vmul.f32 %v1359, %v1109
    %1363 = vrot.lane.b32.xlu0 %v1360, 64
    %v1364 = vpop.permute.xlu0 %1363
    %v1366 = vmul.f32 %v1359, %v1364
    %1368 = vrot.lane.b32.xlu0 %v1366, 32
    %v1369 = vpop.permute.xlu0 %1368
    %v1371 = vadd.f32 %v1361, %v1369
    %v1372 = vtanh.pop %v1371
    %1374 = vrot.lane.b32.xlu0 %v1372, 64
    %v1375 = vpop.permute.xlu0 %1374
    %v1377 = vmul.f32 %v1359, %v1375
    %v1378 = vsel %vm1269, %v1377, %v1108
    %v1379 = vsel %vm1269, %v1371, %v1109
    %v1380 = vsel %vm1269, %v1377, 0.0
    %v1383 = vunpack.c.l.s4 1966171168
    %v1384 = vunpack.c.0.s8 %v1383
    %v1385 = vlaneseq
    %v1386 = vshrl.u32 %v1385, 7
    %v1387 = vsub.s32 %v1384, %v1386
    %v1388 = vrot.slane %v1380, %v1387
    %v1389 = vcombine.high %v1388, %v1388
    %v1391 = vunpack.c.l.s4 1966171168
    %v1392 = vunpack.c.0.s8 %v1391
    %v1393 = vlaneseq
    %v1394 = vshrl.u32 %v1393, 7
    %v1395 = vsub.s32 %v1392, %v1394
    %v1396 = vrot.slane %v1388, %v1395
    %v1398 = vunpack.c.l.s4 1966171168
    %v1399 = vunpack.c.0.s8 %v1398
    %v1400 = vlaneseq
    %v1401 = vshrl.u32 %v1400, 7
    %v1402 = vsub.s32 %v1399, %v1401
    %v1403 = vrot.slane %v1389, %v1402
    %v1404 = vlaneseq
    %v1405 = vshrl.u32 %v1404, 7
    %v1406 = vsub.s32 0, %v1405
    %v1407 = vrot.slane %v1396, %v1406
    %v1408 = vlaneseq
    %v1409 = vshrl.u32 %v1408, 7
    %v1410 = vsub.s32 0, %v1409
    %v1411 = vrot.slane %v1403, %v1410
    %1412 = vrot.lane.b32.xlu0 %v1407, 32
    %v1413 = vpop.permute.xlu0 %1412
    %1414 = vrot.lane.b32.xlu0 %v1411, 32
    %v1415 = vpop.permute.xlu0 %1414
    %1418 = vst.msk [vmem:[#allocation5 + $0x4] sm:$0x1] %vm338, %v1413
    %1419 = vst.msk [vmem:[#allocation5 + $0xc] sm:$0x1] %vm338, %v1415
    %vm1420 = vcmp.gt.s32.totalorder %v62, 5
    %s1421 = sld [smem:[#allocation2 + $0x5]]
    %s1422 = scalar_lea.vmem %s2, %s1421
    %v1423 = vld [vmem:[%s1422] sm:$0x1]
    %s1424 = sld [smem:[#allocation2 + $0x85]]
    %s1425 = scalar_lea.vmem %s2, %s1424
    %v1426 = vld [vmem:[%s1425] sm:$0x1]
    %v1428 = vlaneseq
    %v1429 = vshrl.u32 %v1428, 7
    %v1430 = vsub.s32 0, %v1429
    %v1431 = vrot.slane %v1426, %v1430
    %v1433 = vsel %vm76, %v1423, %v1431
    %1434 = vrot.lane.b32.xlu0 %v1270, 64
    %v1435 = vpop.permute.xlu0 %1434
    %v1437 = vsel %vm78, %v1433, %v1435
    %v1439 = vsel %vm86, %v1437, 0
    %1441 = vmatprep.subr.mxu0 0.0
    %1442 = vmatpush1.msra.mxu0 %v44
    %1443 = vmatprep.subr.mxu0 0.0
    %1444 = vmatpush1.msra.mxu0 %v45
    %1445 = vmatprep.subr.mxu0 0.0
    %1446 = vmatpush1.msra.mxu0 %v46
    %1447 = vmatprep.subr.mxu0 0.0
    %1448 = vmatpush1.msra.mxu0 %v47
    %1449 = vmatprep.subr.mxu0 0.0
    %1450 = vmatpush1.msra.mxu0 %v48
    %1451 = vmatprep.subr.mxu0 0.0
    %1452 = vmatpush1.msra.mxu0 %v49
    %1453 = vmatprep.subr.mxu0 0.0
    %1454 = vmatpush1.msra.mxu0 %v50
    %1455 = vmatprep.subr.mxu0 0.0
    %1456 = vmatpush1.msra.mxu0 %v51
    %1457 = vmatprep.subr.mxu0 0.0
    %1458 = vmatpush1.msra.mxu0 0.0
    %1459 = vmatprep.subr.mxu0 0.0
    %1460 = vmatpush1.msra.mxu0 0.0
    %1461 = vmatprep.subr.mxu0 0.0
    %1462 = vmatpush1.msra.mxu0 0.0
    %1463 = vmatprep.subr.mxu0 0.0
    %1464 = vmatpush1.msra.mxu0 0.0
    %1465 = vmatprep.subr.mxu0 0.0
    %1466 = vmatpush1.msra.mxu0 0.0
    %1467 = vmatprep.subr.mxu0 0.0
    %1468 = vmatpush1.msra.mxu0 0.0
    %1469 = vmatprep.subr.mxu0 0.0
    %1470 = vmatpush1.msra.mxu0 0.0
    %1471 = vmatprep.subr.mxu0 0.0
    %1472 = vmatpush1.msra.mxu0 0.0
    %1473 = vmatprep.subr.mxu0 0.0
    %1474 = vmatpush1.msra.mxu0 0.0
    %1475 = vmatprep.subr.mxu0 0.0
    %1476 = vmatpush1.msra.mxu0 0.0
    %1477 = vmatprep.subr.mxu0 0.0
    %1478 = vmatpush1.msra.mxu0 0.0
    %1479 = vmatprep.subr.mxu0 0.0
    %1480 = vmatpush1.msra.mxu0 0.0
    %1481 = vmatprep.subr.mxu0 0.0
    %1482 = vmatpush1.msra.mxu0 0.0
    %1483 = vmatprep.subr.mxu0 0.0
    %1484 = vmatpush1.msra.mxu0 0.0
    %1485 = vmatprep.subr.mxu0 0.0
    %1486 = vmatpush1.msra.mxu0 0.0
    %1487 = vmatprep.subr.mxu0 0.0
    %1488 = vmatpush1.msra.mxu0 0.0
    %1489 = vmatprep.subr.mxu0 0.0
    %1490 = vmatpush1.msra.mxu0 0.0
    %1491 = vmatprep.subr.mxu0 0.0
    %1492 = vmatpush1.msra.mxu0 0.0
    %1493 = vmatprep.subr.mxu0 0.0
    %1494 = vmatpush1.msra.mxu0 0.0
    %1495 = vmatprep.subr.mxu0 0.0
    %1496 = vmatpush1.msra.mxu0 0.0
    %1497 = vmatprep.subr.mxu0 0.0
    %1498 = vmatpush1.msra.mxu0 0.0
    %1499 = vmatprep.subr.mxu0 0.0
    %1500 = vmatpush1.msra.mxu0 0.0
    %1501 = vmatprep.subr.mxu0 0.0
    %1502 = vmatpush1.msra.mxu0 0.0
    %1503 = vmatprep.subr.mxu0 0.0
    %1504 = vmatpush1.msra.mxu0 0.0
    %1505 = vmatprep.mubr.f32.mxu0 0.0
    %1506 = vmatmul.mubr.f32.gmra.mrb[0].mxu0 %v1439
    %v1507 = vpop.f32.mrb[0].mxu0
    %v1508 = vadd.f32 %v84, %v1507
    %v1509 = vpop.f32.mrb[0].mxu0
    %1510 = vdwg.mxu0
    %v1511 = vxor.u32 %v1508, 2147483648
    %v1512 = vmul.f32 %v1511, 1.442695
    %v1513 = vpow.pop %v1512
    %v1514 = vadd.f32 %v1513, 1.0
    %v1515 = vrcp.pop %v1514
    %v1516 = vmul.f32 1.0, %v1515
    %v1517 = vtanh.pop %v1508
    %v1518 = vmul.f32 %v1516, %v1271
    %1520 = vrot.lane.b32.xlu0 %v1517, 64
    %v1521 = vpop.permute.xlu0 %1520
    %v1523 = vmul.f32 %v1516, %v1521
    %1525 = vrot.lane.b32.xlu0 %v1523, 32
    %v1526 = vpop.permute.xlu0 %1525
    %v1528 = vadd.f32 %v1518, %v1526
    %v1529 = vtanh.pop %v1528
    %1531 = vrot.lane.b32.xlu0 %v1529, 64
    %v1532 = vpop.permute.xlu0 %1531
    %v1534 = vmul.f32 %v1516, %v1532
    %v1535 = vsel %vm1420, 1, 0
    %1536 = vset.pattern.permute.xlu0 0
    %1537 = vperm.xlu0 %1536, %v1535
    %v1538 = vpop.permute.xlu0 %1537
    %vm1539 = vcmp.eq.s32.totalorder %v1538, 1
    %v1540 = vsel %vm1539, %v1534, %v1270
    %v1541 = vsel %vm1539, %v1528, %v1271
    %1543 = vrot.lane.b32.xlu0 %v1540, 32
    %v1544 = vpop.permute.xlu0 %1543
    %1547 = vrot.lane.b32.xlu0 %v1378, 64
    %v1548 = vpop.permute.xlu0 %1547
    %v1550 = vsel %vm78, %v1544, %v1548
    %v1552 = vsel %vm86, %v1550, 0
    %1554 = vmatprep.subr.mxu0 0.0
    %1555 = vmatpush1.msra.mxu0 %v53
    %1556 = vmatprep.subr.mxu0 0.0
    %1557 = vmatpush1.msra.mxu0 %v54
    %1558 = vmatprep.subr.mxu0 0.0
    %1559 = vmatpush1.msra.mxu0 %v55
    %1560 = vmatprep.subr.mxu0 0.0
    %1561 = vmatpush1.msra.mxu0 %v56
    %1562 = vmatprep.subr.mxu0 0.0
    %1563 = vmatpush1.msra.mxu0 %v57
    %1564 = vmatprep.subr.mxu0 0.0
    %1565 = vmatpush1.msra.mxu0 %v58
    %1566 = vmatprep.subr.mxu0 0.0
    %1567 = vmatpush1.msra.mxu0 %v59
    %1568 = vmatprep.subr.mxu0 0.0
    %1569 = vmatpush1.msra.mxu0 %v60
    %1570 = vmatprep.subr.mxu0 0.0
    %1571 = vmatpush1.msra.mxu0 0.0
    %1572 = vmatprep.subr.mxu0 0.0
    %1573 = vmatpush1.msra.mxu0 0.0
    %1574 = vmatprep.subr.mxu0 0.0
    %1575 = vmatpush1.msra.mxu0 0.0
    %1576 = vmatprep.subr.mxu0 0.0
    %1577 = vmatpush1.msra.mxu0 0.0
    %1578 = vmatprep.subr.mxu0 0.0
    %1579 = vmatpush1.msra.mxu0 0.0
    %1580 = vmatprep.subr.mxu0 0.0
    %1581 = vmatpush1.msra.mxu0 0.0
    %1582 = vmatprep.subr.mxu0 0.0
    %1583 = vmatpush1.msra.mxu0 0.0
    %1584 = vmatprep.subr.mxu0 0.0
    %1585 = vmatpush1.msra.mxu0 0.0
    %1586 = vmatprep.subr.mxu0 0.0
    %1587 = vmatpush1.msra.mxu0 0.0
    %1588 = vmatprep.subr.mxu0 0.0
    %1589 = vmatpush1.msra.mxu0 0.0
    %1590 = vmatprep.subr.mxu0 0.0
    %1591 = vmatpush1.msra.mxu0 0.0
    %1592 = vmatprep.subr.mxu0 0.0
    %1593 = vmatpush1.msra.mxu0 0.0
    %1594 = vmatprep.subr.mxu0 0.0
    %1595 = vmatpush1.msra.mxu0 0.0
    %1596 = vmatprep.subr.mxu0 0.0
    %1597 = vmatpush1.msra.mxu0 0.0
    %1598 = vmatprep.subr.mxu0 0.0
    %1599 = vmatpush1.msra.mxu0 0.0
    %1600 = vmatprep.subr.mxu0 0.0
    %1601 = vmatpush1.msra.mxu0 0.0
    %1602 = vmatprep.subr.mxu0 0.0
    %1603 = vmatpush1.msra.mxu0 0.0
    %1604 = vmatprep.subr.mxu0 0.0
    %1605 = vmatpush1.msra.mxu0 0.0
    %1606 = vmatprep.subr.mxu0 0.0
    %1607 = vmatpush1.msra.mxu0 0.0
    %1608 = vmatprep.subr.mxu0 0.0
    %1609 = vmatpush1.msra.mxu0 0.0
    %1610 = vmatprep.subr.mxu0 0.0
    %1611 = vmatpush1.msra.mxu0 0.0
    %1612 = vmatprep.subr.mxu0 0.0
    %1613 = vmatpush1.msra.mxu0 0.0
    %1614 = vmatprep.subr.mxu0 0.0
    %1615 = vmatpush1.msra.mxu0 0.0
    %1616 = vmatprep.subr.mxu0 0.0
    %1617 = vmatpush1.msra.mxu0 0.0
    %1618 = vmatprep.mubr.f32.mxu0 0.0
    %1619 = vmatmul.mubr.f32.gmra.mrb[0].mxu0 %v1552
    %v1620 = vpop.f32.mrb[0].mxu0
    %v1621 = vadd.f32 %v200, %v1620
    %v1622 = vpop.f32.mrb[0].mxu0
    %1623 = vdwg.mxu0
    %v1624 = vxor.u32 %v1621, 2147483648
    %v1625 = vmul.f32 %v1624, 1.442695
    %v1626 = vpow.pop %v1625
    %v1627 = vadd.f32 %v1626, 1.0
    %v1628 = vrcp.pop %v1627
    %v1629 = vmul.f32 1.0, %v1628
    %v1630 = vtanh.pop %v1621
    %v1631 = vmul.f32 %v1629, %v1379
    %1633 = vrot.lane.b32.xlu0 %v1630, 64
    %v1634 = vpop.permute.xlu0 %1633
    %v1636 = vmul.f32 %v1629, %v1634
    %1638 = vrot.lane.b32.xlu0 %v1636, 32
    %v1639 = vpop.permute.xlu0 %1638
    %v1641 = vadd.f32 %v1631, %v1639
    %v1642 = vtanh.pop %v1641
    %1644 = vrot.lane.b32.xlu0 %v1642, 64
    %v1645 = vpop.permute.xlu0 %1644
    %v1647 = vmul.f32 %v1629, %v1645
    %v1648 = vsel %vm1539, %v1647, %v1378
    %v1649 = vsel %vm1539, %v1641, %v1379
    %v1650 = vsel %vm1539, %v1647, 0.0
    %v1653 = vunpack.c.l.s4 1966171168
    %v1654 = vunpack.c.0.s8 %v1653
    %v1655 = vlaneseq
    %v1656 = vshrl.u32 %v1655, 7
    %v1657 = vsub.s32 %v1654, %v1656
    %v1658 = vrot.slane %v1650, %v1657
    %v1659 = vcombine.high %v1658, %v1658
    %v1661 = vunpack.c.l.s4 1966171168
    %v1662 = vunpack.c.0.s8 %v1661
    %v1663 = vlaneseq
    %v1664 = vshrl.u32 %v1663, 7
    %v1665 = vsub.s32 %v1662, %v1664
    %v1666 = vrot.slane %v1658, %v1665
    %v1668 = vunpack.c.l.s4 1966171168
    %v1669 = vunpack.c.0.s8 %v1668
    %v1670 = vlaneseq
    %v1671 = vshrl.u32 %v1670, 7
    %v1672 = vsub.s32 %v1669, %v1671
    %v1673 = vrot.slane %v1659, %v1672
    %v1674 = vlaneseq
    %v1675 = vshrl.u32 %v1674, 7
    %v1676 = vsub.s32 0, %v1675
    %v1677 = vrot.slane %v1666, %v1676
    %v1678 = vlaneseq
    %v1679 = vshrl.u32 %v1678, 7
    %v1680 = vsub.s32 0, %v1679
    %v1681 = vrot.slane %v1673, %v1680
    %1682 = vrot.lane.b32.xlu0 %v1677, 32
    %v1683 = vpop.permute.xlu0 %1682
    %1684 = vrot.lane.b32.xlu0 %v1681, 32
    %v1685 = vpop.permute.xlu0 %1684
    %1688 = vst.msk [vmem:[#allocation5 + $0x5] sm:$0x1] %vm338, %v1683
    %1689 = vst.msk [vmem:[#allocation5 + $0xd] sm:$0x1] %vm338, %v1685
    %vm1690 = vcmp.gt.s32.totalorder %v62, 6
    %s1691 = sld [smem:[#allocation2 + $0x6]]
    %s1692 = scalar_lea.vmem %s2, %s1691
    %v1693 = vld [vmem:[%s1692] sm:$0x1]
    %s1694 = sld [smem:[#allocation2 + $0x86]]
    %s1695 = scalar_lea.vmem %s2, %s1694
    %v1696 = vld [vmem:[%s1695] sm:$0x1]
    %v1698 = vlaneseq
    %v1699 = vshrl.u32 %v1698, 7
    %v1700 = vsub.s32 0, %v1699
    %v1701 = vrot.slane %v1696, %v1700
    %v1703 = vsel %vm76, %v1693, %v1701
    %1704 = vrot.lane.b32.xlu0 %v1540, 64
    %v1705 = vpop.permute.xlu0 %1704
    %v1707 = vsel %vm78, %v1703, %v1705
    %v1709 = vsel %vm86, %v1707, 0
    %1711 = vmatprep.subr.mxu0 0.0
    %1712 = vmatpush1.msra.mxu0 %v44
    %1713 = vmatprep.subr.mxu0 0.0
    %1714 = vmatpush1.msra.mxu0 %v45
    %1715 = vmatprep.subr.mxu0 0.0
    %1716 = vmatpush1.msra.mxu0 %v46
    %1717 = vmatprep.subr.mxu0 0.0
    %1718 = vmatpush1.msra.mxu0 %v47
    %1719 = vmatprep.subr.mxu0 0.0
    %1720 = vmatpush1.msra.mxu0 %v48
    %1721 = vmatprep.subr.mxu0 0.0
    %1722 = vmatpush1.msra.mxu0 %v49
    %1723 = vmatprep.subr.mxu0 0.0
    %1724 = vmatpush1.msra.mxu0 %v50
    %1725 = vmatprep.subr.mxu0 0.0
    %1726 = vmatpush1.msra.mxu0 %v51
    %1727 = vmatprep.subr.mxu0 0.0
    %1728 = vmatpush1.msra.mxu0 0.0
    %1729 = vmatprep.subr.mxu0 0.0
    %1730 = vmatpush1.msra.mxu0 0.0
    %1731 = vmatprep.subr.mxu0 0.0
    %1732 = vmatpush1.msra.mxu0 0.0
    %1733 = vmatprep.subr.mxu0 0.0
    %1734 = vmatpush1.msra.mxu0 0.0
    %1735 = vmatprep.subr.mxu0 0.0
    %1736 = vmatpush1.msra.mxu0 0.0
    %1737 = vmatprep.subr.mxu0 0.0
    %1738 = vmatpush1.msra.mxu0 0.0
    %1739 = vmatprep.subr.mxu0 0.0
    %1740 = vmatpush1.msra.mxu0 0.0
    %1741 = vmatprep.subr.mxu0 0.0
    %1742 = vmatpush1.msra.mxu0 0.0
    %1743 = vmatprep.subr.mxu0 0.0
    %1744 = vmatpush1.msra.mxu0 0.0
    %1745 = vmatprep.subr.mxu0 0.0
    %1746 = vmatpush1.msra.mxu0 0.0
    %1747 = vmatprep.subr.mxu0 0.0
    %1748 = vmatpush1.msra.mxu0 0.0
    %1749 = vmatprep.subr.mxu0 0.0
    %1750 = vmatpush1.msra.mxu0 0.0
    %1751 = vmatprep.subr.mxu0 0.0
    %1752 = vmatpush1.msra.mxu0 0.0
    %1753 = vmatprep.subr.mxu0 0.0
    %1754 = vmatpush1.msra.mxu0 0.0
    %1755 = vmatprep.subr.mxu0 0.0
    %1756 = vmatpush1.msra.mxu0 0.0
    %1757 = vmatprep.subr.mxu0 0.0
    %1758 = vmatpush1.msra.mxu0 0.0
    %1759 = vmatprep.subr.mxu0 0.0
    %1760 = vmatpush1.msra.mxu0 0.0
    %1761 = vmatprep.subr.mxu0 0.0
    %1762 = vmatpush1.msra.mxu0 0.0
    %1763 = vmatprep.subr.mxu0 0.0
    %1764 = vmatpush1.msra.mxu0 0.0
    %1765 = vmatprep.subr.mxu0 0.0
    %1766 = vmatpush1.msra.mxu0 0.0
    %1767 = vmatprep.subr.mxu0 0.0
    %1768 = vmatpush1.msra.mxu0 0.0
    %1769 = vmatprep.subr.mxu0 0.0
    %1770 = vmatpush1.msra.mxu0 0.0
    %1771 = vmatprep.subr.mxu0 0.0
    %1772 = vmatpush1.msra.mxu0 0.0
    %1773 = vmatprep.subr.mxu0 0.0
    %1774 = vmatpush1.msra.mxu0 0.0
    %1775 = vmatprep.mubr.f32.mxu0 0.0
    %1776 = vmatmul.mubr.f32.gmra.mrb[0].mxu0 %v1709
    %v1777 = vpop.f32.mrb[0].mxu0
    %v1778 = vadd.f32 %v84, %v1777
    %v1779 = vpop.f32.mrb[0].mxu0
    %1780 = vdwg.mxu0
    %v1781 = vxor.u32 %v1778, 2147483648
    %v1782 = vmul.f32 %v1781, 1.442695
    %v1783 = vpow.pop %v1782
    %v1784 = vadd.f32 %v1783, 1.0
    %v1785 = vrcp.pop %v1784
    %v1786 = vmul.f32 1.0, %v1785
    %v1787 = vtanh.pop %v1778
    %v1788 = vmul.f32 %v1786, %v1541
    %1790 = vrot.lane.b32.xlu0 %v1787, 64
    %v1791 = vpop.permute.xlu0 %1790
    %v1793 = vmul.f32 %v1786, %v1791
    %1795 = vrot.lane.b32.xlu0 %v1793, 32
    %v1796 = vpop.permute.xlu0 %1795
    %v1798 = vadd.f32 %v1788, %v1796
    %v1799 = vtanh.pop %v1798
    %1801 = vrot.lane.b32.xlu0 %v1799, 64
    %v1802 = vpop.permute.xlu0 %1801
    %v1804 = vmul.f32 %v1786, %v1802
    %v1805 = vsel %vm1690, 1, 0
    %1806 = vset.pattern.permute.xlu0 0
    %1807 = vperm.xlu0 %1806, %v1805
    %v1808 = vpop.permute.xlu0 %1807
    %vm1809 = vcmp.eq.s32.totalorder %v1808, 1
    %v1810 = vsel %vm1809, %v1804, %v1540
    %v1811 = vsel %vm1809, %v1798, %v1541
    %1813 = vrot.lane.b32.xlu0 %v1810, 32
    %v1814 = vpop.permute.xlu0 %1813
    %1817 = vrot.lane.b32.xlu0 %v1648, 64
    %v1818 = vpop.permute.xlu0 %1817
    %v1820 = vsel %vm78, %v1814, %v1818
    %v1822 = vsel %vm86, %v1820, 0
    %1824 = vmatprep.subr.mxu0 0.0
    %1825 = vmatpush1.msra.mxu0 %v53
    %1826 = vmatprep.subr.mxu0 0.0
    %1827 = vmatpush1.msra.mxu0 %v54
    %1828 = vmatprep.subr.mxu0 0.0
    %1829 = vmatpush1.msra.mxu0 %v55
    %1830 = vmatprep.subr.mxu0 0.0
    %1831 = vmatpush1.msra.mxu0 %v56
    %1832 = vmatprep.subr.mxu0 0.0
    %1833 = vmatpush1.msra.mxu0 %v57
    %1834 = vmatprep.subr.mxu0 0.0
    %1835 = vmatpush1.msra.mxu0 %v58
    %1836 = vmatprep.subr.mxu0 0.0
    %1837 = vmatpush1.msra.mxu0 %v59
    %1838 = vmatprep.subr.mxu0 0.0
    %1839 = vmatpush1.msra.mxu0 %v60
    %1840 = vmatprep.subr.mxu0 0.0
    %1841 = vmatpush1.msra.mxu0 0.0
    %1842 = vmatprep.subr.mxu0 0.0
    %1843 = vmatpush1.msra.mxu0 0.0
    %1844 = vmatprep.subr.mxu0 0.0
    %1845 = vmatpush1.msra.mxu0 0.0
    %1846 = vmatprep.subr.mxu0 0.0
    %1847 = vmatpush1.msra.mxu0 0.0
    %1848 = vmatprep.subr.mxu0 0.0
    %1849 = vmatpush1.msra.mxu0 0.0
    %1850 = vmatprep.subr.mxu0 0.0
    %1851 = vmatpush1.msra.mxu0 0.0
    %1852 = vmatprep.subr.mxu0 0.0
    %1853 = vmatpush1.msra.mxu0 0.0
    %1854 = vmatprep.subr.mxu0 0.0
    %1855 = vmatpush1.msra.mxu0 0.0
    %1856 = vmatprep.subr.mxu0 0.0
    %1857 = vmatpush1.msra.mxu0 0.0
    %1858 = vmatprep.subr.mxu0 0.0
    %1859 = vmatpush1.msra.mxu0 0.0
    %1860 = vmatprep.subr.mxu0 0.0
    %1861 = vmatpush1.msra.mxu0 0.0
    %1862 = vmatprep.subr.mxu0 0.0
    %1863 = vmatpush1.msra.mxu0 0.0
    %1864 = vmatprep.subr.mxu0 0.0
    %1865 = vmatpush1.msra.mxu0 0.0
    %1866 = vmatprep.subr.mxu0 0.0
    %1867 = vmatpush1.msra.mxu0 0.0
    %1868 = vmatprep.subr.mxu0 0.0
    %1869 = vmatpush1.msra.mxu0 0.0
    %1870 = vmatprep.subr.mxu0 0.0
    %1871 = vmatpush1.msra.mxu0 0.0
    %1872 = vmatprep.subr.mxu0 0.0
    %1873 = vmatpush1.msra.mxu0 0.0
    %1874 = vmatprep.subr.mxu0 0.0
    %1875 = vmatpush1.msra.mxu0 0.0
    %1876 = vmatprep.subr.mxu0 0.0
    %1877 = vmatpush1.msra.mxu0 0.0
    %1878 = vmatprep.subr.mxu0 0.0
    %1879 = vmatpush1.msra.mxu0 0.0
    %1880 = vmatprep.subr.mxu0 0.0
    %1881 = vmatpush1.msra.mxu0 0.0
    %1882 = vmatprep.subr.mxu0 0.0
    %1883 = vmatpush1.msra.mxu0 0.0
    %1884 = vmatprep.subr.mxu0 0.0
    %1885 = vmatpush1.msra.mxu0 0.0
    %1886 = vmatprep.subr.mxu0 0.0
    %1887 = vmatpush1.msra.mxu0 0.0
    %1888 = vmatprep.mubr.f32.mxu0 0.0
    %1889 = vmatmul.mubr.f32.gmra.mrb[0].mxu0 %v1822
    %v1890 = vpop.f32.mrb[0].mxu0
    %v1891 = vadd.f32 %v200, %v1890
    %v1892 = vpop.f32.mrb[0].mxu0
    %1893 = vdwg.mxu0
    %v1894 = vxor.u32 %v1891, 2147483648
    %v1895 = vmul.f32 %v1894, 1.442695
    %v1896 = vpow.pop %v1895
    %v1897 = vadd.f32 %v1896, 1.0
    %v1898 = vrcp.pop %v1897
    %v1899 = vmul.f32 1.0, %v1898
    %v1900 = vtanh.pop %v1891
    %v1901 = vmul.f32 %v1899, %v1649
    %1903 = vrot.lane.b32.xlu0 %v1900, 64
    %v1904 = vpop.permute.xlu0 %1903
    %v1906 = vmul.f32 %v1899, %v1904
    %1908 = vrot.lane.b32.xlu0 %v1906, 32
    %v1909 = vpop.permute.xlu0 %1908
    %v1911 = vadd.f32 %v1901, %v1909
    %v1912 = vtanh.pop %v1911
    %1914 = vrot.lane.b32.xlu0 %v1912, 64
    %v1915 = vpop.permute.xlu0 %1914
    %v1917 = vmul.f32 %v1899, %v1915
    %v1918 = vsel %vm1809, %v1917, %v1648
    %v1919 = vsel %vm1809, %v1911, %v1649
    %v1920 = vsel %vm1809, %v1917, 0.0
    %v1923 = vunpack.c.l.s4 1966171168
    %v1924 = vunpack.c.0.s8 %v1923
    %v1925 = vlaneseq
    %v1926 = vshrl.u32 %v1925, 7
    %v1927 = vsub.s32 %v1924, %v1926
    %v1928 = vrot.slane %v1920, %v1927
    %v1929 = vcombine.high %v1928, %v1928
    %v1931 = vunpack.c.l.s4 1966171168
    %v1932 = vunpack.c.0.s8 %v1931
    %v1933 = vlaneseq
    %v1934 = vshrl.u32 %v1933, 7
    %v1935 = vsub.s32 %v1932, %v1934
    %v1936 = vrot.slane %v1928, %v1935
    %v1938 = vunpack.c.l.s4 1966171168
    %v1939 = vunpack.c.0.s8 %v1938
    %v1940 = vlaneseq
    %v1941 = vshrl.u32 %v1940, 7
    %v1942 = vsub.s32 %v1939, %v1941
    %v1943 = vrot.slane %v1929, %v1942
    %v1944 = vlaneseq
    %v1945 = vshrl.u32 %v1944, 7
    %v1946 = vsub.s32 0, %v1945
    %v1947 = vrot.slane %v1936, %v1946
    %v1948 = vlaneseq
    %v1949 = vshrl.u32 %v1948, 7
    %v1950 = vsub.s32 0, %v1949
    %v1951 = vrot.slane %v1943, %v1950
    %1952 = vrot.lane.b32.xlu0 %v1947, 32
    %v1953 = vpop.permute.xlu0 %1952
    %1954 = vrot.lane.b32.xlu0 %v1951, 32
    %v1955 = vpop.permute.xlu0 %1954
    %1958 = vst.msk [vmem:[#allocation5 + $0x6] sm:$0x1] %vm338, %v1953
    %1959 = vst.msk [vmem:[#allocation5 + $0xe] sm:$0x1] %vm338, %v1955
    %vm1960 = vcmp.gt.s32.totalorder %v62, 7
    %s1961 = sld [smem:[#allocation2 + $0x7]]
    %s1962 = scalar_lea.vmem %s2, %s1961
    %v1963 = vld [vmem:[%s1962] sm:$0x1]
    %s1964 = sld [smem:[#allocation2 + $0x87]]
    %s1965 = scalar_lea.vmem %s2, %s1964
    %v1966 = vld [vmem:[%s1965] sm:$0x1]
    %v1968 = vlaneseq
    %v1969 = vshrl.u32 %v1968, 7
    %v1970 = vsub.s32 0, %v1969
    %v1971 = vrot.slane %v1966, %v1970
    %v1973 = vsel %vm76, %v1963, %v1971
    %1974 = vrot.lane.b32.xlu0 %v1810, 64
    %v1975 = vpop.permute.xlu0 %1974
    %v1977 = vsel %vm78, %v1973, %v1975
    %v1979 = vsel %vm86, %v1977, 0
    %1981 = vmatprep.subr.mxu0 0.0
    %1982 = vmatpush1.msra.mxu0 %v44
    %1983 = vmatprep.subr.mxu0 0.0
    %1984 = vmatpush1.msra.mxu0 %v45
    %1985 = vmatprep.subr.mxu0 0.0
    %1986 = vmatpush1.msra.mxu0 %v46
    %1987 = vmatprep.subr.mxu0 0.0
    %1988 = vmatpush1.msra.mxu0 %v47
    %1989 = vmatprep.subr.mxu0 0.0
    %1990 = vmatpush1.msra.mxu0 %v48
    %1991 = vmatprep.subr.mxu0 0.0
    %1992 = vmatpush1.msra.mxu0 %v49
    %1993 = vmatprep.subr.mxu0 0.0
    %1994 = vmatpush1.msra.mxu0 %v50
    %1995 = vmatprep.subr.mxu0 0.0
    %1996 = vmatpush1.msra.mxu0 %v51
    %1997 = vmatprep.subr.mxu0 0.0
    %1998 = vmatpush1.msra.mxu0 0.0
    %1999 = vmatprep.subr.mxu0 0.0
    %2000 = vmatpush1.msra.mxu0 0.0
    %2001 = vmatprep.subr.mxu0 0.0
    %2002 = vmatpush1.msra.mxu0 0.0
    %2003 = vmatprep.subr.mxu0 0.0
    %2004 = vmatpush1.msra.mxu0 0.0
    %2005 = vmatprep.subr.mxu0 0.0
    %2006 = vmatpush1.msra.mxu0 0.0
    %2007 = vmatprep.subr.mxu0 0.0
    %2008 = vmatpush1.msra.mxu0 0.0
    %2009 = vmatprep.subr.mxu0 0.0
    %2010 = vmatpush1.msra.mxu0 0.0
    %2011 = vmatprep.subr.mxu0 0.0
    %2012 = vmatpush1.msra.mxu0 0.0
    %2013 = vmatprep.subr.mxu0 0.0
    %2014 = vmatpush1.msra.mxu0 0.0
    %2015 = vmatprep.subr.mxu0 0.0
    %2016 = vmatpush1.msra.mxu0 0.0
    %2017 = vmatprep.subr.mxu0 0.0
    %2018 = vmatpush1.msra.mxu0 0.0
    %2019 = vmatprep.subr.mxu0 0.0
    %2020 = vmatpush1.msra.mxu0 0.0
    %2021 = vmatprep.subr.mxu0 0.0
    %2022 = vmatpush1.msra.mxu0 0.0
    %2023 = vmatprep.subr.mxu0 0.0
    %2024 = vmatpush1.msra.mxu0 0.0
    %2025 = vmatprep.subr.mxu0 0.0
    %2026 = vmatpush1.msra.mxu0 0.0
    %2027 = vmatprep.subr.mxu0 0.0
    %2028 = vmatpush1.msra.mxu0 0.0
    %2029 = vmatprep.subr.mxu0 0.0
    %2030 = vmatpush1.msra.mxu0 0.0
    %2031 = vmatprep.subr.mxu0 0.0
    %2032 = vmatpush1.msra.mxu0 0.0
    %2033 = vmatprep.subr.mxu0 0.0
    %2034 = vmatpush1.msra.mxu0 0.0
    %2035 = vmatprep.subr.mxu0 0.0
    %2036 = vmatpush1.msra.mxu0 0.0
    %2037 = vmatprep.subr.mxu0 0.0
    %2038 = vmatpush1.msra.mxu0 0.0
    %2039 = vmatprep.subr.mxu0 0.0
    %2040 = vmatpush1.msra.mxu0 0.0
    %2041 = vmatprep.subr.mxu0 0.0
    %2042 = vmatpush1.msra.mxu0 0.0
    %2043 = vmatprep.subr.mxu0 0.0
    %2044 = vmatpush1.msra.mxu0 0.0
    %2045 = vmatprep.mubr.f32.mxu0 0.0
    %2046 = vmatmul.mubr.f32.gmra.mrb[0].mxu0 %v1979
    %v2047 = vpop.f32.mrb[0].mxu0
    %v2048 = vadd.f32 %v84, %v2047
    %v2049 = vpop.f32.mrb[0].mxu0
    %2050 = vdwg.mxu0
    %v2051 = vxor.u32 %v2048, 2147483648
    %v2052 = vmul.f32 %v2051, 1.442695
    %v2053 = vpow.pop %v2052
    %v2054 = vadd.f32 %v2053, 1.0
    %v2055 = vrcp.pop %v2054
    %v2056 = vmul.f32 1.0, %v2055
    %v2057 = vtanh.pop %v2048
    %v2058 = vmul.f32 %v2056, %v1811
    %2060 = vrot.lane.b32.xlu0 %v2057, 64
    %v2061 = vpop.permute.xlu0 %2060
    %v2063 = vmul.f32 %v2056, %v2061
    %2065 = vrot.lane.b32.xlu0 %v2063, 32
    %v2066 = vpop.permute.xlu0 %2065
    %v2068 = vadd.f32 %v2058, %v2066
    %v2069 = vtanh.pop %v2068
    %2071 = vrot.lane.b32.xlu0 %v2069, 64
    %v2072 = vpop.permute.xlu0 %2071
    %v2074 = vmul.f32 %v2056, %v2072
    %v2075 = vsel %vm1960, 1, 0
    %2076 = vset.pattern.permute.xlu0 0
    %2077 = vperm.xlu0 %2076, %v2075
    %v2078 = vpop.permute.xlu0 %2077
    %vm2079 = vcmp.eq.s32.totalorder %v2078, 1
    %v2080 = vsel %vm2079, %v2074, %v1810
    %v2081 = vsel %vm2079, %v2068, %v1811
    %2083 = vrot.lane.b32.xlu0 %v2080, 32
    %v2084 = vpop.permute.xlu0 %2083
    %2087 = vrot.lane.b32.xlu0 %v1918, 64
    %v2088 = vpop.permute.xlu0 %2087
    %v2090 = vsel %vm78, %v2084, %v2088
    %v2092 = vsel %vm86, %v2090, 0
    %2094 = vmatprep.subr.mxu0 0.0
    %2095 = vmatpush1.msra.mxu0 %v53
    %2096 = vmatprep.subr.mxu0 0.0
    %2097 = vmatpush1.msra.mxu0 %v54
    %2098 = vmatprep.subr.mxu0 0.0
    %2099 = vmatpush1.msra.mxu0 %v55
    %2100 = vmatprep.subr.mxu0 0.0
    %2101 = vmatpush1.msra.mxu0 %v56
    %2102 = vmatprep.subr.mxu0 0.0
    %2103 = vmatpush1.msra.mxu0 %v57
    %2104 = vmatprep.subr.mxu0 0.0
    %2105 = vmatpush1.msra.mxu0 %v58
    %2106 = vmatprep.subr.mxu0 0.0
    %2107 = vmatpush1.msra.mxu0 %v59
    %2108 = vmatprep.subr.mxu0 0.0
    %2109 = vmatpush1.msra.mxu0 %v60
    %2110 = vmatprep.subr.mxu0 0.0
    %2111 = vmatpush1.msra.mxu0 0.0
    %2112 = vmatprep.subr.mxu0 0.0
    %2113 = vmatpush1.msra.mxu0 0.0
    %2114 = vmatprep.subr.mxu0 0.0
    %2115 = vmatpush1.msra.mxu0 0.0
    %2116 = vmatprep.subr.mxu0 0.0
    %2117 = vmatpush1.msra.mxu0 0.0
    %2118 = vmatprep.subr.mxu0 0.0
    %2119 = vmatpush1.msra.mxu0 0.0
    %2120 = vmatprep.subr.mxu0 0.0
    %2121 = vmatpush1.msra.mxu0 0.0
    %2122 = vmatprep.subr.mxu0 0.0
    %2123 = vmatpush1.msra.mxu0 0.0
    %2124 = vmatprep.subr.mxu0 0.0
    %2125 = vmatpush1.msra.mxu0 0.0
    %2126 = vmatprep.subr.mxu0 0.0
    %2127 = vmatpush1.msra.mxu0 0.0
    %2128 = vmatprep.subr.mxu0 0.0
    %2129 = vmatpush1.msra.mxu0 0.0
    %2130 = vmatprep.subr.mxu0 0.0
    %2131 = vmatpush1.msra.mxu0 0.0
    %2132 = vmatprep.subr.mxu0 0.0
    %2133 = vmatpush1.msra.mxu0 0.0
    %2134 = vmatprep.subr.mxu0 0.0
    %2135 = vmatpush1.msra.mxu0 0.0
    %2136 = vmatprep.subr.mxu0 0.0
    %2137 = vmatpush1.msra.mxu0 0.0
    %2138 = vmatprep.subr.mxu0 0.0
    %2139 = vmatpush1.msra.mxu0 0.0
    %2140 = vmatprep.subr.mxu0 0.0
    %2141 = vmatpush1.msra.mxu0 0.0
    %2142 = vmatprep.subr.mxu0 0.0
    %2143 = vmatpush1.msra.mxu0 0.0
    %2144 = vmatprep.subr.mxu0 0.0
    %2145 = vmatpush1.msra.mxu0 0.0
    %2146 = vmatprep.subr.mxu0 0.0
    %2147 = vmatpush1.msra.mxu0 0.0
    %2148 = vmatprep.subr.mxu0 0.0
    %2149 = vmatpush1.msra.mxu0 0.0
    %2150 = vmatprep.subr.mxu0 0.0
    %2151 = vmatpush1.msra.mxu0 0.0
    %2152 = vmatprep.subr.mxu0 0.0
    %2153 = vmatpush1.msra.mxu0 0.0
    %2154 = vmatprep.subr.mxu0 0.0
    %2155 = vmatpush1.msra.mxu0 0.0
    %2156 = vmatprep.subr.mxu0 0.0
    %2157 = vmatpush1.msra.mxu0 0.0
    %2158 = vmatprep.mubr.f32.mxu0 0.0
    %2159 = vmatmul.mubr.f32.gmra.mrb[0].mxu0 %v2092
    %v2160 = vpop.f32.mrb[0].mxu0
    %v2161 = vadd.f32 %v200, %v2160
    %v2162 = vpop.f32.mrb[0].mxu0
    %2163 = vdwg.mxu0
    %v2164 = vxor.u32 %v2161, 2147483648
    %v2165 = vmul.f32 %v2164, 1.442695
    %v2166 = vpow.pop %v2165
    %v2167 = vadd.f32 %v2166, 1.0
    %v2168 = vrcp.pop %v2167
    %v2169 = vmul.f32 1.0, %v2168
    %v2170 = vtanh.pop %v2161
    %v2171 = vmul.f32 %v2169, %v1919
    %2173 = vrot.lane.b32.xlu0 %v2170, 64
    %v2174 = vpop.permute.xlu0 %2173
    %v2176 = vmul.f32 %v2169, %v2174
    %2178 = vrot.lane.b32.xlu0 %v2176, 32
    %v2179 = vpop.permute.xlu0 %2178
    %v2181 = vadd.f32 %v2171, %v2179
    %v2182 = vtanh.pop %v2181
    %2184 = vrot.lane.b32.xlu0 %v2182, 64
    %v2185 = vpop.permute.xlu0 %2184
    %v2187 = vmul.f32 %v2169, %v2185
    %v2188 = vsel %vm2079, %v2187, %v1918
    %v2189 = vsel %vm2079, %v2181, %v1919
    %v2190 = vsel %vm2079, %v2187, 0.0
    %v2193 = vunpack.c.l.s4 1966171168
    %v2194 = vunpack.c.0.s8 %v2193
    %v2195 = vlaneseq
    %v2196 = vshrl.u32 %v2195, 7
    %v2197 = vsub.s32 %v2194, %v2196
    %v2198 = vrot.slane %v2190, %v2197
    %v2199 = vcombine.high %v2198, %v2198
    %v2201 = vunpack.c.l.s4 1966171168
    %v2202 = vunpack.c.0.s8 %v2201
    %v2203 = vlaneseq
    %v2204 = vshrl.u32 %v2203, 7
    %v2205 = vsub.s32 %v2202, %v2204
    %v2206 = vrot.slane %v2198, %v2205
    %v2208 = vunpack.c.l.s4 1966171168
    %v2209 = vunpack.c.0.s8 %v2208
    %v2210 = vlaneseq
    %v2211 = vshrl.u32 %v2210, 7
    %v2212 = vsub.s32 %v2209, %v2211
    %v2213 = vrot.slane %v2199, %v2212
    %v2214 = vlaneseq
    %v2215 = vshrl.u32 %v2214, 7
    %v2216 = vsub.s32 0, %v2215
    %v2217 = vrot.slane %v2206, %v2216
    %v2218 = vlaneseq
    %v2219 = vshrl.u32 %v2218, 7
    %v2220 = vsub.s32 0, %v2219
    %v2221 = vrot.slane %v2213, %v2220
    %2222 = vrot.lane.b32.xlu0 %v2217, 32
    %v2223 = vpop.permute.xlu0 %2222
    %2224 = vrot.lane.b32.xlu0 %v2221, 32
    %v2225 = vpop.permute.xlu0 %2224
    %2228 = vst.msk [vmem:[#allocation5 + $0x7] sm:$0x1] %vm338, %v2223
    %2229 = vst.msk [vmem:[#allocation5 + $0xf] sm:$0x1] %vm338, %v2225
    %vm2230 = vcmask 254976
    %2231 = vst.msk [vmem:[#allocation6] sm:$0x3] %vm2230, %v2084
    %2233 = vrot.lane.b32.xlu0 %v2188, 32
    %v2234 = vpop.permute.xlu0 %2233
    %s2236 = scalar_lea.vmem [#allocation6], 2
    %2237 = vst.msk [vmem:[%s2236] sm:$0x3] %vm2230, %v2234
    %2239 = vrot.lane.b32.xlu0 %v2081, 96
    %v2240 = vpop.permute.xlu0 %2239
    %2242 = vst.msk [vmem:[#allocation8] sm:$0x3] %vm2230, %v2240
    %2244 = vrot.lane.b32.xlu0 %v2189, 96
    %v2245 = vpop.permute.xlu0 %2244
    %s2247 = scalar_lea.vmem [#allocation8], 2
    %2248 = vst.msk [vmem:[%s2247] sm:$0x3] %vm2230, %v2245
    // Predicated region
    $region34: #{encoder_forward.1} parent=1 // pred_check
      _
    $region35: #{encoder_forward.1} parent=1 // pred_check_branch
      %2250 = sbr.rel (0) target = $region37
    $region36: #{encoder_forward.1} parent=1 // pred_region
      %s2252 = ssub.s32 256, 256
      %2253 = vsyncadd [#allocation3], %s2252
      %s2254 = sshll.u32 [#allocation5], 4
      %s2255 = int_to_ptr.vmem [resolvable:$true] %s2254
      %2260 = dma.vmem_to_hbm [thread:$0]  %s2255, 256, %s7, [#allocation3], 128, 128, 8
    $region37: #{encoder_forward.1} parent=1 // pred_fallthru
      _
    // Predicated region
    $region38: #{encoder_forward.1} parent=1 // pred_check
      _
    $region39: #{encoder_forward.1} parent=1 // pred_check_branch
      %2262 = sbr.rel (0) target = $region41
    $region40: #{encoder_forward.1} parent=1 // pred_region
      %s2264 = ssub.s32 64, 64
      %2265 = vsyncadd [#allocation7], %s2264
      %s2266 = sshll.u32 [#allocation6], 4
      %s2267 = int_to_ptr.vmem [resolvable:$true] %s2266
      %2272 = dma.vmem_to_hbm [thread:$0]  %s2267, 64, %s8, [#allocation7], 32, 32, 2
    $region41: #{encoder_forward.1} parent=1 // pred_fallthru
      _
    // Predicated region
    $region42: #{encoder_forward.1} parent=1 // pred_check
      _
    $region43: #{encoder_forward.1} parent=1 // pred_check_branch
      %2274 = sbr.rel (0) target = $region45
    $region44: #{encoder_forward.1} parent=1 // pred_region
      %s2276 = ssub.s32 64, 64
      %2277 = vsyncadd [#allocation7], %s2276
      %s2278 = sshll.u32 [#allocation8], 4
      %s2279 = int_to_ptr.vmem [resolvable:$true] %s2278
      %2284 = dma.vmem_to_hbm [thread:$0]  %s2279, 64, %s9, [#allocation7], 32, 32, 2
    $region45: #{encoder_forward.1} parent=1 // pred_fallthru
      _
    // Predicated region
    $region46: #{encoder_forward.1} parent=1 // pred_check
      _
    $region47: #{encoder_forward.1} parent=1 // pred_check_branch
      %2286 = sbr.rel (0) target = $region49
    $region48: #{encoder_forward.1} parent=1 // pred_region
      %2287 = dma.done [#allocation3], 256
    $region49: #{encoder_forward.1} parent=1 // pred_fallthru
      _
    // Predicated region
    $region50: #{encoder_forward.1} parent=1 // pred_check
      _
    $region51: #{encoder_forward.1} parent=1 // pred_check_branch
      %2289 = sbr.rel (0) target = $region53
    $region52: #{encoder_forward.1} parent=1 // pred_region
      %2290 = dma.done [#allocation7], 64
    $region53: #{encoder_forward.1} parent=1 // pred_fallthru
      _
    // Predicated region
    $region54: #{encoder_forward.1} parent=1 // pred_check
      _
    $region55: #{encoder_forward.1} parent=1 // pred_check_branch
      %2292 = sbr.rel (0) target = $region57
    $region56: #{encoder_forward.1} parent=1 // pred_region
      %2293 = dma.done [#allocation7], 64
    $region57: #{encoder_forward.1} parent=1 // pred_fallthru
      _
    %2294 = vsyncpa [#allocation3], 1
    %2295 = vsyncpa [#allocation7], 1
    %2296 = vsyncpa [#allocation4], 1

</llo_original>
